<compile_context>
chip_gen: v7x
topology: tpu7x:2x2x1
jax: 0.10.0
libtpu: 0.0.40
codegen_flags: <defaults>
</compile_context>

<pallas_src>
import functools

import jax
import jax.numpy as jnp
from jax import lax
from jax.experimental import pallas as pl
from jax.experimental.pallas import tpu as pltpu


def _gru_decoder_kernel(x_ref, h0_ref, wi_ref, wh_ref, b_ref, wlin_ref,
                        out_ref, hout_ref, *, seq_len, bp, hidden_dim, d_out):
  """Whole GRU decoder forward in a single invocation.

  x_ref:    (T*BP, D)   time-major rows (row = t*BP + b), batch padded to BP
  h0_ref:   (BP, H)     initial hidden (padded rows are zero / discarded)
  wi_ref:   (D, 3H)     = w_ih.T   (gate order r, z, n along lanes)
  wh_ref:   (H, 3H)     = w_hh.T
  b_ref:    (3, max(3H, d_out)) row0 = [b_ir+b_hr | b_iz+b_hz | b_in],
                                row1 = [0 | 0 | b_hn], row2 = [b_lin | 0...]
  wlin_ref: (H, d_out)  = w_lin.T
  out_ref:  (T*BP, d_out); hout_ref: (BP, H)
  """
  H = hidden_dim
  x2 = x_ref[...].astype(jnp.float32)                              # (T*BP, D)

  # Hoisted input-side gate pre-activations: one fused MXU call for all three
  # gates over the whole sequence, folded biases added once.
  gi = jnp.dot(x2, wi_ref[...],
               preferred_element_type=jnp.float32) + b_ref[0:1, 0:3 * H]

  wh = wh_ref[...]                                                 # (H, 3H)
  bnh = b_ref[1:2, 2 * H:3 * H]                                    # (1, H)
  blin = b_ref[2:3, 0:d_out]                                       # (1, d_out)

  h = h0_ref[...].astype(jnp.float32)                              # (BP, H)

  # Serial recurrence, fully unrolled. One fused (BP,H)x(H,3H) matmul per step;
  # gate extraction is static lane slicing (XLU slot, off the MXU chain).
  hs = []
  for t in range(seq_len):
    lo = t * bp
    g = gi[lo:lo + bp]                                             # whole tile
    gh = jnp.dot(h, wh, preferred_element_type=jnp.float32)        # (BP, 3H)
    r = jax.nn.sigmoid(g[:, 0:H] + gh[:, 0:H])
    z = jax.nn.sigmoid(g[:, H:2 * H] + gh[:, H:2 * H])
    n = jnp.tanh(g[:, 2 * H:3 * H] + r * (gh[:, 2 * H:3 * H] + bnh))
    h = (1.0 - z) * n + z * h
    hs.append(h)

  # Hidden states kept in registers; one bulk output projection + one store.
  h_all = jnp.concatenate(hs, axis=0)                              # (T*BP, H)
  out = jnp.dot(h_all, wlin_ref[...],
                preferred_element_type=jnp.float32) + blin
  out_ref[...] = out.astype(out_ref.dtype)

  # Final hidden written exactly once.
  hout_ref[...] = h.astype(hout_ref.dtype)


def prepare_params(params):
  """One-time packing of the GRU/Linear weights (hoisted off the call path)."""
  f32 = lambda a: a.astype(jnp.float32)
  w_ih, w_hh = f32(params["w_ih"]), f32(params["w_hh"])     # (3H, D), (3H, H)
  b_ih, b_hh = f32(params["b_ih"]), f32(params["b_hh"])     # (3H,), (3H,)
  H = w_hh.shape[-1]
  w_lin, b_lin = f32(params["w_lin"]), f32(params["b_lin"])  # (D_out, H), (D_out,)
  d_out = w_lin.shape[0]

  three_h = 3 * H
  bw = max(three_h, d_out)
  # Row 0: input-side biases with r/z hidden biases folded in; n keeps b_in only.
  row0 = jnp.concatenate([b_ih[0:H] + b_hh[0:H],
                          b_ih[H:2 * H] + b_hh[H:2 * H],
                          b_ih[2 * H:3 * H]])
  row0 = jnp.zeros((bw,), jnp.float32).at[0:three_h].set(row0)
  # Row 1: hidden-side bias of the n gate (added inside the r*(...) term).
  row1 = jnp.zeros((bw,), jnp.float32).at[2 * H:3 * H].set(b_hh[2 * H:3 * H])
  # Row 2: output Linear bias.
  row2 = jnp.zeros((bw,), jnp.float32).at[0:d_out].set(b_lin)
  b_all = jnp.stack([row0, row1, row2], axis=0)               # (3, bw)

  return {
      "w_i_cat": w_ih.T,          # (D, 3H)  columns already ordered r|z|n
      "w_h_cat": w_hh.T,          # (H, 3H)
      "b_all": b_all,             # (3, bw)
      "w_lin_t": w_lin.T,         # (H, d_out)
      "hidden_dim": H,
      "d_out": d_out,
  }


def decoder_forward(inputs, hidden, prep, *, batch_first=True):
  """Pallas equivalent of Deocder.forward (cell_type='GRU').

  Args:
    inputs: (B, T, input_dims) if batch_first else (T, B, input_dims)
    hidden: (1, B, H) with H = 2 * sum(hidden_structs)
    prep:   output of prepare_params(params)
  Returns:
    (outputs, hiddens): outputs in the same layout as `inputs` with feature
    dim = input_dims; hiddens is (1, B, H).
  """
  if batch_first:
    x = jnp.transpose(inputs, (1, 0, 2))          # -> (T, B, D) time-major
  else:
    x = inputs

  T, B, D = x.shape
  H = prep["hidden_dim"]
  d_out = prep["d_out"]
  BP = ((B + 7) // 8) * 8                         # pad batch to sublane tile

  x_pad = jnp.pad(x, ((0, 0), (0, BP - B), (0, 0))).reshape(T * BP, D)
  h0_pad = jnp.zeros((BP, H), jnp.float32).at[:B].set(hidden[0].astype(jnp.float32))

  kernel = functools.partial(_gru_decoder_kernel,
                             seq_len=T, bp=BP, hidden_dim=H, d_out=d_out)
  vmem = pl.BlockSpec(memory_space=pltpu.MemorySpace.VMEM)

  out2, h_pad = pl.pallas_call(
      kernel,
      out_shape=(
          jax.ShapeDtypeStruct((T * BP, d_out), inputs.dtype),
          jax.ShapeDtypeStruct((BP, H), hidden.dtype),
      ),
      in_specs=[vmem] * 6,
      out_specs=(vmem, vmem),
  )(x_pad, h0_pad, prep["w_i_cat"], prep["w_h_cat"], prep["b_all"],
    prep["w_lin_t"])

  out = out2.reshape(T, BP, d_out)[:, :B]
  if batch_first:
    out = jnp.transpose(out, (1, 0, 2))           # -> (B, T, input_dims)
  h_last = h_pad[None, :B, :]
  return out, h_last


def reference_forward(inputs, hidden, params, *, batch_first=True):
  """Pure-JAX reference (mirrors PyTorch nn.GRU + nn.Linear)."""
  if batch_first:
    x = jnp.transpose(inputs, (1, 0, 2))
  else:
    x = inputs
  H = hidden.shape[-1]
  w_ih, w_hh = params["w_ih"], params["w_hh"]
  b_ih, b_hh = params["b_ih"], params["b_hh"]

  def step(h, x_t):
    gi = x_t @ w_ih.T + b_ih
    gh = h @ w_hh.T + b_hh
    i_r, i_z, i_n = gi[:, :H], gi[:, H:2 * H], gi[:, 2 * H:]
    h_r, h_z, h_n = gh[:, :H], gh[:, H:2 * H], gh[:, 2 * H:]
    r = jax.nn.sigmoid(i_r + h_r)
    z = jax.nn.sigmoid(i_z + h_z)
    n = jnp.tanh(i_n + r * h_n)
    h_new = (1.0 - z) * n + z * h
    return h_new, h_new

  h_last, hs = lax.scan(step, hidden[0], x)
  out = hs @ params["w_lin"].T + params["b_lin"]
  if batch_first:
    out = jnp.transpose(out, (1, 0, 2))
  return out, h_last[None]


if __name__ == "__main__":
  # Module config: hidden_structs=[8, 8] -> hidden_dim = 2*sum = 32,
  # input_dims=4, cell_type='GRU', batch_first=True.
  hidden_structs = [8, 8]
  H = 2 * sum(hidden_structs)     # 32
  input_dims = 4
  B, T = 2, 8

  key = jax.random.PRNGKey(0)
  k = jax.random.split(key, 9)
  bound = 1.0 / jnp.sqrt(H)       # PyTorch default uniform init bound

  params = {
      "w_ih": jax.random.uniform(k[0], (3 * H, input_dims), jnp.float32, -bound, bound),
      "w_hh": jax.random.uniform(k[1], (3 * H, H), jnp.float32, -bound, bound),
      "b_ih": jax.random.uniform(k[2], (3 * H,), jnp.float32, -bound, bound),
      "b_hh": jax.random.uniform(k[3], (3 * H,), jnp.float32, -bound, bound),
      "w_lin": jax.random.uniform(k[4], (input_dims, H), jnp.float32, -bound, bound),
      "b_lin": jax.random.uniform(k[5], (input_dims,), jnp.float32, -bound, bound),
  }

  inputs = jax.random.normal(k[6], (B, T, input_dims), jnp.float32)   # batch_first
  hidden = jax.random.normal(k[7], (1, B, H), jnp.float32)            # (num_layers, B, H)

  # One-time parameter packing (off the per-call path).
  prep = jax.tree_util.tree_map(jax.block_until_ready, prepare_params(params))

  out, h_last = decoder_forward(inputs, hidden, prep, batch_first=True)
  out, h_last = jax.block_until_ready((out, h_last))

  out_ref, h_ref = reference_forward(inputs, hidden, params, batch_first=True)
  assert out.shape == (B, T, input_dims)
  assert h_last.shape == (1, B, H)
  assert jnp.allclose(out, out_ref, atol=1e-5, rtol=1e-5)
  assert jnp.allclose(h_last, h_ref, atol=1e-5, rtol=1e-5)

  print("KERNEL_OK")
</pallas_src>

<mosaic_0001>
module attributes {stable_mosaic.version = 11 : i64} {
  func.func @_gru_decoder_kernel(%arg0: memref<64x4xf32, #tpu.memory_space<vmem>>, %arg1: memref<8x32xf32, #tpu.memory_space<vmem>>, %arg2: memref<4x96xf32, #tpu.memory_space<vmem>>, %arg3: memref<32x96xf32, #tpu.memory_space<vmem>>, %arg4: memref<3x96xf32, #tpu.memory_space<vmem>>, %arg5: memref<32x4xf32, #tpu.memory_space<vmem>>, %arg6: memref<64x4xf32, #tpu.memory_space<vmem>>, %arg7: memref<8x32xf32, #tpu.memory_space<vmem>>) attributes {dimension_semantics = [], scalar_prefetch = 0 : i64, scratch_operands = 0 : i64, tpu.core_type = #tpu.core_type<tc>} {
    %c0 = arith.constant 0 : index
    %c0_0 = arith.constant 0 : index
    %0 = vector.load %arg0[%c0, %c0_0] : memref<64x4xf32, #tpu.memory_space<vmem>>, vector<64x4xf32>
    %c0_1 = arith.constant 0 : index
    %c0_2 = arith.constant 0 : index
    %1 = vector.load %arg2[%c0_1, %c0_2] : memref<4x96xf32, #tpu.memory_space<vmem>>, vector<4x96xf32>
    %cst = arith.constant dense<0.000000e+00> : vector<64x96xf32>
    %2 = tpu.matmul %0, %1, %cst {dimension_numbers = #tpu.dot_dimension_numbers<[1], [0], [0], [1], [0, 0, 1, 1], [], []>} : vector<64x4xf32>, vector<4x96xf32>, vector<64x96xf32> -> vector<64x96xf32>
    %c0_3 = arith.constant 0 : index
    %c0_4 = arith.constant 0 : index
    %3 = vector.load %arg4[%c0_3, %c0_4] : memref<3x96xf32, #tpu.memory_space<vmem>>, vector<1x96xf32>
    %4 = vector.broadcast %3 : vector<1x96xf32> to vector<64x96xf32>
    %5 = arith.addf %2, %4 : vector<64x96xf32>
    %c0_5 = arith.constant 0 : index
    %c0_6 = arith.constant 0 : index
    %6 = vector.load %arg3[%c0_5, %c0_6] : memref<32x96xf32, #tpu.memory_space<vmem>>, vector<32x96xf32>
    %c1 = arith.constant 1 : index
    %c64 = arith.constant 64 : index
    %7 = vector.load %arg4[%c1, %c64] : memref<3x96xf32, #tpu.memory_space<vmem>>, vector<1x32xf32>
    %c2 = arith.constant 2 : index
    %c0_7 = arith.constant 0 : index
    %8 = vector.load %arg4[%c2, %c0_7] : memref<3x96xf32, #tpu.memory_space<vmem>>, vector<1x4xf32>
    %c0_8 = arith.constant 0 : index
    %c0_9 = arith.constant 0 : index
    %9 = vector.load %arg1[%c0_8, %c0_9] : memref<8x32xf32, #tpu.memory_space<vmem>>, vector<8x32xf32>
    %10 = vector.extract_strided_slice %5 {offsets = [0, 0], sizes = [8, 96], strides = [1, 1]} : vector<64x96xf32> to vector<8x96xf32>
    %cst_10 = arith.constant dense<0.000000e+00> : vector<8x96xf32>
    %11 = tpu.matmul %9, %6, %cst_10 {dimension_numbers = #tpu.dot_dimension_numbers<[1], [0], [0], [1], [0, 0, 1, 1], [], []>} : vector<8x32xf32>, vector<32x96xf32>, vector<8x96xf32> -> vector<8x96xf32>
    %12 = vector.extract_strided_slice %10 {offsets = [0, 0], sizes = [8, 32], strides = [1, 1]} : vector<8x96xf32> to vector<8x32xf32>
    %13 = vector.extract_strided_slice %11 {offsets = [0, 0], sizes = [8, 32], strides = [1, 1]} : vector<8x96xf32> to vector<8x32xf32>
    %14 = arith.addf %12, %13 : vector<8x32xf32>
    %15 = arith.negf %14 : vector<8x32xf32>
    %16 = math.exp %15 : vector<8x32xf32>
    %cst_11 = arith.constant 1.000000e+00 : f32
    %17 = vector.broadcast %cst_11 : f32 to vector<8x32xf32>
    %18 = arith.addf %17, %16 : vector<8x32xf32>
    %19 = arith.divf %17, %18 : vector<8x32xf32>
    %20 = vector.extract_strided_slice %10 {offsets = [0, 32], sizes = [8, 32], strides = [1, 1]} : vector<8x96xf32> to vector<8x32xf32>
    %21 = vector.extract_strided_slice %11 {offsets = [0, 32], sizes = [8, 32], strides = [1, 1]} : vector<8x96xf32> to vector<8x32xf32>
    %22 = arith.addf %20, %21 : vector<8x32xf32>
    %23 = arith.negf %22 : vector<8x32xf32>
    %24 = math.exp %23 : vector<8x32xf32>
    %cst_12 = arith.constant 1.000000e+00 : f32
    %25 = vector.broadcast %cst_12 : f32 to vector<8x32xf32>
    %26 = arith.addf %25, %24 : vector<8x32xf32>
    %27 = arith.divf %25, %26 : vector<8x32xf32>
    %28 = vector.extract_strided_slice %10 {offsets = [0, 64], sizes = [8, 32], strides = [1, 1]} : vector<8x96xf32> to vector<8x32xf32>
    %29 = vector.extract_strided_slice %11 {offsets = [0, 64], sizes = [8, 32], strides = [1, 1]} : vector<8x96xf32> to vector<8x32xf32>
    %30 = vector.broadcast %7 : vector<1x32xf32> to vector<8x32xf32>
    %31 = arith.addf %29, %30 : vector<8x32xf32>
    %32 = arith.mulf %19, %31 : vector<8x32xf32>
    %33 = arith.addf %28, %32 : vector<8x32xf32>
    %34 = math.tanh %33 : vector<8x32xf32>
    %cst_13 = arith.constant 1.000000e+00 : f32
    %35 = vector.broadcast %cst_13 : f32 to vector<8x32xf32>
    %36 = arith.subf %35, %27 : vector<8x32xf32>
    %37 = arith.mulf %36, %34 : vector<8x32xf32>
    %38 = arith.mulf %27, %9 : vector<8x32xf32>
    %39 = arith.addf %37, %38 : vector<8x32xf32>
    %40 = vector.extract_strided_slice %5 {offsets = [8, 0], sizes = [8, 96], strides = [1, 1]} : vector<64x96xf32> to vector<8x96xf32>
    %cst_14 = arith.constant dense<0.000000e+00> : vector<8x96xf32>
    %41 = tpu.matmul %39, %6, %cst_14 {dimension_numbers = #tpu.dot_dimension_numbers<[1], [0], [0], [1], [0, 0, 1, 1], [], []>} : vector<8x32xf32>, vector<32x96xf32>, vector<8x96xf32> -> vector<8x96xf32>
    %42 = vector.extract_strided_slice %40 {offsets = [0, 0], sizes = [8, 32], strides = [1, 1]} : vector<8x96xf32> to vector<8x32xf32>
    %43 = vector.extract_strided_slice %41 {offsets = [0, 0], sizes = [8, 32], strides = [1, 1]} : vector<8x96xf32> to vector<8x32xf32>
    %44 = arith.addf %42, %43 : vector<8x32xf32>
    %45 = arith.negf %44 : vector<8x32xf32>
    %46 = math.exp %45 : vector<8x32xf32>
    %cst_15 = arith.constant 1.000000e+00 : f32
    %47 = vector.broadcast %cst_15 : f32 to vector<8x32xf32>
    %48 = arith.addf %47, %46 : vector<8x32xf32>
    %49 = arith.divf %47, %48 : vector<8x32xf32>
    %50 = vector.extract_strided_slice %40 {offsets = [0, 32], sizes = [8, 32], strides = [1, 1]} : vector<8x96xf32> to vector<8x32xf32>
    %51 = vector.extract_strided_slice %41 {offsets = [0, 32], sizes = [8, 32], strides = [1, 1]} : vector<8x96xf32> to vector<8x32xf32>
    %52 = arith.addf %50, %51 : vector<8x32xf32>
    %53 = arith.negf %52 : vector<8x32xf32>
    %54 = math.exp %53 : vector<8x32xf32>
    %cst_16 = arith.constant 1.000000e+00 : f32
    %55 = vector.broadcast %cst_16 : f32 to vector<8x32xf32>
    %56 = arith.addf %55, %54 : vector<8x32xf32>
    %57 = arith.divf %55, %56 : vector<8x32xf32>
    %58 = vector.extract_strided_slice %40 {offsets = [0, 64], sizes = [8, 32], strides = [1, 1]} : vector<8x96xf32> to vector<8x32xf32>
    %59 = vector.extract_strided_slice %41 {offsets = [0, 64], sizes = [8, 32], strides = [1, 1]} : vector<8x96xf32> to vector<8x32xf32>
    %60 = vector.broadcast %7 : vector<1x32xf32> to vector<8x32xf32>
    %61 = arith.addf %59, %60 : vector<8x32xf32>
    %62 = arith.mulf %49, %61 : vector<8x32xf32>
    %63 = arith.addf %58, %62 : vector<8x32xf32>
    %64 = math.tanh %63 : vector<8x32xf32>
    %cst_17 = arith.constant 1.000000e+00 : f32
    %65 = vector.broadcast %cst_17 : f32 to vector<8x32xf32>
    %66 = arith.subf %65, %57 : vector<8x32xf32>
    %67 = arith.mulf %66, %64 : vector<8x32xf32>
    %68 = arith.mulf %57, %39 : vector<8x32xf32>
    %69 = arith.addf %67, %68 : vector<8x32xf32>
    %70 = vector.extract_strided_slice %5 {offsets = [16, 0], sizes = [8, 96], strides = [1, 1]} : vector<64x96xf32> to vector<8x96xf32>
    %cst_18 = arith.constant dense<0.000000e+00> : vector<8x96xf32>
    %71 = tpu.matmul %69, %6, %cst_18 {dimension_numbers = #tpu.dot_dimension_numbers<[1], [0], [0], [1], [0, 0, 1, 1], [], []>} : vector<8x32xf32>, vector<32x96xf32>, vector<8x96xf32> -> vector<8x96xf32>
    %72 = vector.extract_strided_slice %70 {offsets = [0, 0], sizes = [8, 32], strides = [1, 1]} : vector<8x96xf32> to vector<8x32xf32>
    %73 = vector.extract_strided_slice %71 {offsets = [0, 0], sizes = [8, 32], strides = [1, 1]} : vector<8x96xf32> to vector<8x32xf32>
    %74 = arith.addf %72, %73 : vector<8x32xf32>
    %75 = arith.negf %74 : vector<8x32xf32>
    %76 = math.exp %75 : vector<8x32xf32>
    %cst_19 = arith.constant 1.000000e+00 : f32
    %77 = vector.broadcast %cst_19 : f32 to vector<8x32xf32>
    %78 = arith.addf %77, %76 : vector<8x32xf32>
    %79 = arith.divf %77, %78 : vector<8x32xf32>
    %80 = vector.extract_strided_slice %70 {offsets = [0, 32], sizes = [8, 32], strides = [1, 1]} : vector<8x96xf32> to vector<8x32xf32>
    %81 = vector.extract_strided_slice %71 {offsets = [0, 32], sizes = [8, 32], strides = [1, 1]} : vector<8x96xf32> to vector<8x32xf32>
    %82 = arith.addf %80, %81 : vector<8x32xf32>
    %83 = arith.negf %82 : vector<8x32xf32>
    %84 = math.exp %83 : vector<8x32xf32>
    %cst_20 = arith.constant 1.000000e+00 : f32
    %85 = vector.broadcast %cst_20 : f32 to vector<8x32xf32>
    %86 = arith.addf %85, %84 : vector<8x32xf32>
    %87 = arith.divf %85, %86 : vector<8x32xf32>
    %88 = vector.extract_strided_slice %70 {offsets = [0, 64], sizes = [8, 32], strides = [1, 1]} : vector<8x96xf32> to vector<8x32xf32>
    %89 = vector.extract_strided_slice %71 {offsets = [0, 64], sizes = [8, 32], strides = [1, 1]} : vector<8x96xf32> to vector<8x32xf32>
    %90 = vector.broadcast %7 : vector<1x32xf32> to vector<8x32xf32>
    %91 = arith.addf %89, %90 : vector<8x32xf32>
    %92 = arith.mulf %79, %91 : vector<8x32xf32>
    %93 = arith.addf %88, %92 : vector<8x32xf32>
    %94 = math.tanh %93 : vector<8x32xf32>
    %cst_21 = arith.constant 1.000000e+00 : f32
    %95 = vector.broadcast %cst_21 : f32 to vector<8x32xf32>
    %96 = arith.subf %95, %87 : vector<8x32xf32>
    %97 = arith.mulf %96, %94 : vector<8x32xf32>
    %98 = arith.mulf %87, %69 : vector<8x32xf32>
    %99 = arith.addf %97, %98 : vector<8x32xf32>
    %100 = vector.extract_strided_slice %5 {offsets = [24, 0], sizes = [8, 96], strides = [1, 1]} : vector<64x96xf32> to vector<8x96xf32>
    %cst_22 = arith.constant dense<0.000000e+00> : vector<8x96xf32>
    %101 = tpu.matmul %99, %6, %cst_22 {dimension_numbers = #tpu.dot_dimension_numbers<[1], [0], [0], [1], [0, 0, 1, 1], [], []>} : vector<8x32xf32>, vector<32x96xf32>, vector<8x96xf32> -> vector<8x96xf32>
    %102 = vector.extract_strided_slice %100 {offsets = [0, 0], sizes = [8, 32], strides = [1, 1]} : vector<8x96xf32> to vector<8x32xf32>
    %103 = vector.extract_strided_slice %101 {offsets = [0, 0], sizes = [8, 32], strides = [1, 1]} : vector<8x96xf32> to vector<8x32xf32>
    %104 = arith.addf %102, %103 : vector<8x32xf32>
    %105 = arith.negf %104 : vector<8x32xf32>
    %106 = math.exp %105 : vector<8x32xf32>
    %cst_23 = arith.constant 1.000000e+00 : f32
    %107 = vector.broadcast %cst_23 : f32 to vector<8x32xf32>
    %108 = arith.addf %107, %106 : vector<8x32xf32>
    %109 = arith.divf %107, %108 : vector<8x32xf32>
    %110 = vector.extract_strided_slice %100 {offsets = [0, 32], sizes = [8, 32], strides = [1, 1]} : vector<8x96xf32> to vector<8x32xf32>
    %111 = vector.extract_strided_slice %101 {offsets = [0, 32], sizes = [8, 32], strides = [1, 1]} : vector<8x96xf32> to vector<8x32xf32>
    %112 = arith.addf %110, %111 : vector<8x32xf32>
    %113 = arith.negf %112 : vector<8x32xf32>
    %114 = math.exp %113 : vector<8x32xf32>
    %cst_24 = arith.constant 1.000000e+00 : f32
    %115 = vector.broadcast %cst_24 : f32 to vector<8x32xf32>
    %116 = arith.addf %115, %114 : vector<8x32xf32>
    %117 = arith.divf %115, %116 : vector<8x32xf32>
    %118 = vector.extract_strided_slice %100 {offsets = [0, 64], sizes = [8, 32], strides = [1, 1]} : vector<8x96xf32> to vector<8x32xf32>
    %119 = vector.extract_strided_slice %101 {offsets = [0, 64], sizes = [8, 32], strides = [1, 1]} : vector<8x96xf32> to vector<8x32xf32>
    %120 = vector.broadcast %7 : vector<1x32xf32> to vector<8x32xf32>
    %121 = arith.addf %119, %120 : vector<8x32xf32>
    %122 = arith.mulf %109, %121 : vector<8x32xf32>
    %123 = arith.addf %118, %122 : vector<8x32xf32>
    %124 = math.tanh %123 : vector<8x32xf32>
    %cst_25 = arith.constant 1.000000e+00 : f32
    %125 = vector.broadcast %cst_25 : f32 to vector<8x32xf32>
    %126 = arith.subf %125, %117 : vector<8x32xf32>
    %127 = arith.mulf %126, %124 : vector<8x32xf32>
    %128 = arith.mulf %117, %99 : vector<8x32xf32>
    %129 = arith.addf %127, %128 : vector<8x32xf32>
    %130 = vector.extract_strided_slice %5 {offsets = [32, 0], sizes = [8, 96], strides = [1, 1]} : vector<64x96xf32> to vector<8x96xf32>
    %cst_26 = arith.constant dense<0.000000e+00> : vector<8x96xf32>
    %131 = tpu.matmul %129, %6, %cst_26 {dimension_numbers = #tpu.dot_dimension_numbers<[1], [0], [0], [1], [0, 0, 1, 1], [], []>} : vector<8x32xf32>, vector<32x96xf32>, vector<8x96xf32> -> vector<8x96xf32>
    %132 = vector.extract_strided_slice %130 {offsets = [0, 0], sizes = [8, 32], strides = [1, 1]} : vector<8x96xf32> to vector<8x32xf32>
    %133 = vector.extract_strided_slice %131 {offsets = [0, 0], sizes = [8, 32], strides = [1, 1]} : vector<8x96xf32> to vector<8x32xf32>
    %134 = arith.addf %132, %133 : vector<8x32xf32>
    %135 = arith.negf %134 : vector<8x32xf32>
    %136 = math.exp %135 : vector<8x32xf32>
    %cst_27 = arith.constant 1.000000e+00 : f32
    %137 = vector.broadcast %cst_27 : f32 to vector<8x32xf32>
    %138 = arith.addf %137, %136 : vector<8x32xf32>
    %139 = arith.divf %137, %138 : vector<8x32xf32>
    %140 = vector.extract_strided_slice %130 {offsets = [0, 32], sizes = [8, 32], strides = [1, 1]} : vector<8x96xf32> to vector<8x32xf32>
    %141 = vector.extract_strided_slice %131 {offsets = [0, 32], sizes = [8, 32], strides = [1, 1]} : vector<8x96xf32> to vector<8x32xf32>
    %142 = arith.addf %140, %141 : vector<8x32xf32>
    %143 = arith.negf %142 : vector<8x32xf32>
    %144 = math.exp %143 : vector<8x32xf32>
    %cst_28 = arith.constant 1.000000e+00 : f32
    %145 = vector.broadcast %cst_28 : f32 to vector<8x32xf32>
    %146 = arith.addf %145, %144 : vector<8x32xf32>
    %147 = arith.divf %145, %146 : vector<8x32xf32>
    %148 = vector.extract_strided_slice %130 {offsets = [0, 64], sizes = [8, 32], strides = [1, 1]} : vector<8x96xf32> to vector<8x32xf32>
    %149 = vector.extract_strided_slice %131 {offsets = [0, 64], sizes = [8, 32], strides = [1, 1]} : vector<8x96xf32> to vector<8x32xf32>
    %150 = vector.broadcast %7 : vector<1x32xf32> to vector<8x32xf32>
    %151 = arith.addf %149, %150 : vector<8x32xf32>
    %152 = arith.mulf %139, %151 : vector<8x32xf32>
    %153 = arith.addf %148, %152 : vector<8x32xf32>
    %154 = math.tanh %153 : vector<8x32xf32>
    %cst_29 = arith.constant 1.000000e+00 : f32
    %155 = vector.broadcast %cst_29 : f32 to vector<8x32xf32>
    %156 = arith.subf %155, %147 : vector<8x32xf32>
    %157 = arith.mulf %156, %154 : vector<8x32xf32>
    %158 = arith.mulf %147, %129 : vector<8x32xf32>
    %159 = arith.addf %157, %158 : vector<8x32xf32>
    %160 = vector.extract_strided_slice %5 {offsets = [40, 0], sizes = [8, 96], strides = [1, 1]} : vector<64x96xf32> to vector<8x96xf32>
    %cst_30 = arith.constant dense<0.000000e+00> : vector<8x96xf32>
    %161 = tpu.matmul %159, %6, %cst_30 {dimension_numbers = #tpu.dot_dimension_numbers<[1], [0], [0], [1], [0, 0, 1, 1], [], []>} : vector<8x32xf32>, vector<32x96xf32>, vector<8x96xf32> -> vector<8x96xf32>
    %162 = vector.extract_strided_slice %160 {offsets = [0, 0], sizes = [8, 32], strides = [1, 1]} : vector<8x96xf32> to vector<8x32xf32>
    %163 = vector.extract_strided_slice %161 {offsets = [0, 0], sizes = [8, 32], strides = [1, 1]} : vector<8x96xf32> to vector<8x32xf32>
    %164 = arith.addf %162, %163 : vector<8x32xf32>
    %165 = arith.negf %164 : vector<8x32xf32>
    %166 = math.exp %165 : vector<8x32xf32>
    %cst_31 = arith.constant 1.000000e+00 : f32
    %167 = vector.broadcast %cst_31 : f32 to vector<8x32xf32>
    %168 = arith.addf %167, %166 : vector<8x32xf32>
    %169 = arith.divf %167, %168 : vector<8x32xf32>
    %170 = vector.extract_strided_slice %160 {offsets = [0, 32], sizes = [8, 32], strides = [1, 1]} : vector<8x96xf32> to vector<8x32xf32>
    %171 = vector.extract_strided_slice %161 {offsets = [0, 32], sizes = [8, 32], strides = [1, 1]} : vector<8x96xf32> to vector<8x32xf32>
    %172 = arith.addf %170, %171 : vector<8x32xf32>
    %173 = arith.negf %172 : vector<8x32xf32>
    %174 = math.exp %173 : vector<8x32xf32>
    %cst_32 = arith.constant 1.000000e+00 : f32
    %175 = vector.broadcast %cst_32 : f32 to vector<8x32xf32>
    %176 = arith.addf %175, %174 : vector<8x32xf32>
    %177 = arith.divf %175, %176 : vector<8x32xf32>
    %178 = vector.extract_strided_slice %160 {offsets = [0, 64], sizes = [8, 32], strides = [1, 1]} : vector<8x96xf32> to vector<8x32xf32>
    %179 = vector.extract_strided_slice %161 {offsets = [0, 64], sizes = [8, 32], strides = [1, 1]} : vector<8x96xf32> to vector<8x32xf32>
    %180 = vector.broadcast %7 : vector<1x32xf32> to vector<8x32xf32>
    %181 = arith.addf %179, %180 : vector<8x32xf32>
    %182 = arith.mulf %169, %181 : vector<8x32xf32>
    %183 = arith.addf %178, %182 : vector<8x32xf32>
    %184 = math.tanh %183 : vector<8x32xf32>
    %cst_33 = arith.constant 1.000000e+00 : f32
    %185 = vector.broadcast %cst_33 : f32 to vector<8x32xf32>
    %186 = arith.subf %185, %177 : vector<8x32xf32>
    %187 = arith.mulf %186, %184 : vector<8x32xf32>
    %188 = arith.mulf %177, %159 : vector<8x32xf32>
    %189 = arith.addf %187, %188 : vector<8x32xf32>
    %190 = vector.extract_strided_slice %5 {offsets = [48, 0], sizes = [8, 96], strides = [1, 1]} : vector<64x96xf32> to vector<8x96xf32>
    %cst_34 = arith.constant dense<0.000000e+00> : vector<8x96xf32>
    %191 = tpu.matmul %189, %6, %cst_34 {dimension_numbers = #tpu.dot_dimension_numbers<[1], [0], [0], [1], [0, 0, 1, 1], [], []>} : vector<8x32xf32>, vector<32x96xf32>, vector<8x96xf32> -> vector<8x96xf32>
    %192 = vector.extract_strided_slice %190 {offsets = [0, 0], sizes = [8, 32], strides = [1, 1]} : vector<8x96xf32> to vector<8x32xf32>
    %193 = vector.extract_strided_slice %191 {offsets = [0, 0], sizes = [8, 32], strides = [1, 1]} : vector<8x96xf32> to vector<8x32xf32>
    %194 = arith.addf %192, %193 : vector<8x32xf32>
    %195 = arith.negf %194 : vector<8x32xf32>
    %196 = math.exp %195 : vector<8x32xf32>
    %cst_35 = arith.constant 1.000000e+00 : f32
    %197 = vector.broadcast %cst_35 : f32 to vector<8x32xf32>
    %198 = arith.addf %197, %196 : vector<8x32xf32>
    %199 = arith.divf %197, %198 : vector<8x32xf32>
    %200 = vector.extract_strided_slice %190 {offsets = [0, 32], sizes = [8, 32], strides = [1, 1]} : vector<8x96xf32> to vector<8x32xf32>
    %201 = vector.extract_strided_slice %191 {offsets = [0, 32], sizes = [8, 32], strides = [1, 1]} : vector<8x96xf32> to vector<8x32xf32>
    %202 = arith.addf %200, %201 : vector<8x32xf32>
    %203 = arith.negf %202 : vector<8x32xf32>
    %204 = math.exp %203 : vector<8x32xf32>
    %cst_36 = arith.constant 1.000000e+00 : f32
    %205 = vector.broadcast %cst_36 : f32 to vector<8x32xf32>
    %206 = arith.addf %205, %204 : vector<8x32xf32>
    %207 = arith.divf %205, %206 : vector<8x32xf32>
    %208 = vector.extract_strided_slice %190 {offsets = [0, 64], sizes = [8, 32], strides = [1, 1]} : vector<8x96xf32> to vector<8x32xf32>
    %209 = vector.extract_strided_slice %191 {offsets = [0, 64], sizes = [8, 32], strides = [1, 1]} : vector<8x96xf32> to vector<8x32xf32>
    %210 = vector.broadcast %7 : vector<1x32xf32> to vector<8x32xf32>
    %211 = arith.addf %209, %210 : vector<8x32xf32>
    %212 = arith.mulf %199, %211 : vector<8x32xf32>
    %213 = arith.addf %208, %212 : vector<8x32xf32>
    %214 = math.tanh %213 : vector<8x32xf32>
    %cst_37 = arith.constant 1.000000e+00 : f32
    %215 = vector.broadcast %cst_37 : f32 to vector<8x32xf32>
    %216 = arith.subf %215, %207 : vector<8x32xf32>
    %217 = arith.mulf %216, %214 : vector<8x32xf32>
    %218 = arith.mulf %207, %189 : vector<8x32xf32>
    %219 = arith.addf %217, %218 : vector<8x32xf32>
    %220 = vector.extract_strided_slice %5 {offsets = [56, 0], sizes = [8, 96], strides = [1, 1]} : vector<64x96xf32> to vector<8x96xf32>
    %cst_38 = arith.constant dense<0.000000e+00> : vector<8x96xf32>
    %221 = tpu.matmul %219, %6, %cst_38 {dimension_numbers = #tpu.dot_dimension_numbers<[1], [0], [0], [1], [0, 0, 1, 1], [], []>} : vector<8x32xf32>, vector<32x96xf32>, vector<8x96xf32> -> vector<8x96xf32>
    %222 = vector.extract_strided_slice %220 {offsets = [0, 0], sizes = [8, 32], strides = [1, 1]} : vector<8x96xf32> to vector<8x32xf32>
    %223 = vector.extract_strided_slice %221 {offsets = [0, 0], sizes = [8, 32], strides = [1, 1]} : vector<8x96xf32> to vector<8x32xf32>
    %224 = arith.addf %222, %223 : vector<8x32xf32>
    %225 = arith.negf %224 : vector<8x32xf32>
    %226 = math.exp %225 : vector<8x32xf32>
    %cst_39 = arith.constant 1.000000e+00 : f32
    %227 = vector.broadcast %cst_39 : f32 to vector<8x32xf32>
    %228 = arith.addf %227, %226 : vector<8x32xf32>
    %229 = arith.divf %227, %228 : vector<8x32xf32>
    %230 = vector.extract_strided_slice %220 {offsets = [0, 32], sizes = [8, 32], strides = [1, 1]} : vector<8x96xf32> to vector<8x32xf32>
    %231 = vector.extract_strided_slice %221 {offsets = [0, 32], sizes = [8, 32], strides = [1, 1]} : vector<8x96xf32> to vector<8x32xf32>
    %232 = arith.addf %230, %231 : vector<8x32xf32>
    %233 = arith.negf %232 : vector<8x32xf32>
    %234 = math.exp %233 : vector<8x32xf32>
    %cst_40 = arith.constant 1.000000e+00 : f32
    %235 = vector.broadcast %cst_40 : f32 to vector<8x32xf32>
    %236 = arith.addf %235, %234 : vector<8x32xf32>
    %237 = arith.divf %235, %236 : vector<8x32xf32>
    %238 = vector.extract_strided_slice %220 {offsets = [0, 64], sizes = [8, 32], strides = [1, 1]} : vector<8x96xf32> to vector<8x32xf32>
    %239 = vector.extract_strided_slice %221 {offsets = [0, 64], sizes = [8, 32], strides = [1, 1]} : vector<8x96xf32> to vector<8x32xf32>
    %240 = vector.broadcast %7 : vector<1x32xf32> to vector<8x32xf32>
    %241 = arith.addf %239, %240 : vector<8x32xf32>
    %242 = arith.mulf %229, %241 : vector<8x32xf32>
    %243 = arith.addf %238, %242 : vector<8x32xf32>
    %244 = math.tanh %243 : vector<8x32xf32>
    %cst_41 = arith.constant 1.000000e+00 : f32
    %245 = vector.broadcast %cst_41 : f32 to vector<8x32xf32>
    %246 = arith.subf %245, %237 : vector<8x32xf32>
    %247 = arith.mulf %246, %244 : vector<8x32xf32>
    %248 = arith.mulf %237, %219 : vector<8x32xf32>
    %249 = arith.addf %247, %248 : vector<8x32xf32>
    %250 = tpu.concatenate %39, %69, %99, %129, %159, %189, %219, %249 in 0 : vector<8x32xf32>, vector<8x32xf32>, vector<8x32xf32>, vector<8x32xf32>, vector<8x32xf32>, vector<8x32xf32>, vector<8x32xf32>, vector<8x32xf32> -> vector<64x32xf32>
    %c0_42 = arith.constant 0 : index
    %c0_43 = arith.constant 0 : index
    %251 = vector.load %arg5[%c0_42, %c0_43] : memref<32x4xf32, #tpu.memory_space<vmem>>, vector<32x4xf32>
    %cst_44 = arith.constant dense<0.000000e+00> : vector<64x4xf32>
    %252 = tpu.matmul %250, %251, %cst_44 {dimension_numbers = #tpu.dot_dimension_numbers<[1], [0], [0], [1], [0, 0, 1, 1], [], []>} : vector<64x32xf32>, vector<32x4xf32>, vector<64x4xf32> -> vector<64x4xf32>
    %253 = vector.broadcast %8 : vector<1x4xf32> to vector<64x4xf32>
    %254 = arith.addf %252, %253 : vector<64x4xf32>
    %c0_45 = arith.constant 0 : index
    %c0_46 = arith.constant 0 : index
    %255 = vector.load %arg6[%c0_45, %c0_46] : memref<64x4xf32, #tpu.memory_space<vmem>>, vector<64x4xf32>
    tpu.vector_store %arg6[%c0_45, %c0_46], %254 {strides = array<i32>} : memref<64x4xf32, #tpu.memory_space<vmem>>, vector<64x4xf32>,
    %c0_47 = arith.constant 0 : index
    %c0_48 = arith.constant 0 : index
    %256 = vector.load %arg7[%c0_47, %c0_48] : memref<8x32xf32, #tpu.memory_space<vmem>>, vector<8x32xf32>
    tpu.vector_store %arg7[%c0_47, %c0_48], %249 {strides = array<i32>} : memref<8x32xf32, #tpu.memory_space<vmem>>, vector<8x32xf32>,
    return
  }
}

</mosaic_0001>

<llo_original>
// kernel: tpu_custom_call.1
$region0: #{tpu_custom_call.1}
  #allocation0 [shape = 'u32[]', space=smem, size = 0x4, offset = 0x4, fixed_abs, tag = 'smem constant byte address 0x4 - core index']
  #allocation1 [shape = 'u32[144,128]{1,0:T(1,128)}', space=vmem, size = 0x12000, scoped, tag = 'internal scratch']
  %s0 = inlined_call_operand.vmem [shape: f32[64,4], index: 0, kind: input, shape index: {}]
  %s1 = inlined_call_operand.vmem [shape: f32[8,32], index: 1, kind: input, shape index: {}]
  %s2 = inlined_call_operand.vmem [shape: f32[4,96], index: 2, kind: input, shape index: {}]
  %s3 = inlined_call_operand.vmem [shape: f32[32,96], index: 3, kind: input, shape index: {}]
  %s4 = inlined_call_operand.vmem [shape: f32[3,96], index: 4, kind: input, shape index: {}]
  %s5 = inlined_call_operand.vmem [shape: f32[32,4], index: 5, kind: input, shape index: {}]
  %s6 = inlined_call_operand.vmem [shape: f32[64,4], index: 6, kind: output, shape index: {0}]
  %s7 = inlined_call_operand.hbm [shape: f32[8,32], index: 7, kind: output, shape index: {1}]
  %8 = xla_tuple %s6, %s7
  %s9 = sld [smem:[#allocation0]]
  $region42: #{tpu_custom_call.1} parent=0
    _
  %s11 = ssub.s32 1, %s9
  %s12 = scalar_select 0, %s11, %s9
  $region1: #{tpu_custom_call.1} parent=0
    #allocation2 [shape = 'u8[4096]{0}', space=vmem, size = 0x1000, scoped, tag = 'output window, operand 1, single buffered']
    #allocation3 [shape = 's32[1]{0}', space=sflag, size = 0x4, scoped, tag = 'scoped memory for tpu_custom_call.1']
    %13 = vsyncpa [#allocation3], 0
    // Predicated region
    $region2: #{tpu_custom_call.1} parent=1 // pred_check
      _
    $region3: #{tpu_custom_call.1} parent=1 // pred_check_branch
      %15 = sbr.rel (0) target = $region5
    $region4: #{tpu_custom_call.1} parent=1 // pred_region
      _
    $region5: #{tpu_custom_call.1} parent=1 // pred_fallthru
      _
    // Predicated region
    $region6: #{tpu_custom_call.1} parent=1 // pred_check
      _
    $region7: #{tpu_custom_call.1} parent=1 // pred_check_branch
      %17 = sbr.rel (0) target = $region9
    $region8: #{tpu_custom_call.1} parent=1 // pred_region
      _
    $region9: #{tpu_custom_call.1} parent=1 // pred_fallthru
      _
    // Predicated region
    $region10: #{tpu_custom_call.1} parent=1 // pred_check
      _
    $region11: #{tpu_custom_call.1} parent=1 // pred_check_branch
      %19 = sbr.rel (0) target = $region13
    $region12: #{tpu_custom_call.1} parent=1 // pred_region
      _
    $region13: #{tpu_custom_call.1} parent=1 // pred_fallthru
      _
    // Predicated region
    $region14: #{tpu_custom_call.1} parent=1 // pred_check
      _
    $region15: #{tpu_custom_call.1} parent=1 // pred_check_branch
      %21 = sbr.rel (0) target = $region17
    $region16: #{tpu_custom_call.1} parent=1 // pred_region
      _
    $region17: #{tpu_custom_call.1} parent=1 // pred_fallthru
      _
    // Predicated region
    $region18: #{tpu_custom_call.1} parent=1 // pred_check
      _
    $region19: #{tpu_custom_call.1} parent=1 // pred_check_branch
      %23 = sbr.rel (0) target = $region21
    $region20: #{tpu_custom_call.1} parent=1 // pred_region
      _
    $region21: #{tpu_custom_call.1} parent=1 // pred_fallthru
      _
    // Predicated region
    $region22: #{tpu_custom_call.1} parent=1 // pred_check
      _
    $region23: #{tpu_custom_call.1} parent=1 // pred_check_branch
      %25 = sbr.rel (0) target = $region25
    $region24: #{tpu_custom_call.1} parent=1 // pred_region
      _
    $region25: #{tpu_custom_call.1} parent=1 // pred_fallthru
      _
    %v26 = vld [vmem:[%s0] sm:$0xff]
    %v27 = vld [vmem:[%s0 + $0x8] sm:$0xff]
    %v28 = vld [vmem:[%s0 + $0x10] sm:$0xff]
    %v29 = vld [vmem:[%s0 + $0x18] sm:$0xff]
    %v30 = vld [vmem:[%s0 + $0x20] sm:$0xff]
    %v31 = vld [vmem:[%s0 + $0x28] sm:$0xff]
    %v32 = vld [vmem:[%s0 + $0x30] sm:$0xff]
    %v33 = vld [vmem:[%s0 + $0x38] sm:$0xff]
    %v34 = vld [vmem:[%s2] sm:$0xf]
    %v35 = vld [vmem:[%s4] sm:$0x1]
    %v36 = vlaneseq
    %v37 = vshrl.u32 %v36, 7
    %v38 = vsub.s32 0, %v37
    %v39 = vrot.slane %v35, %v38
    %vm40 = vcmask 31744
    %v42 = vsel %vm40, %v26, 0
    %v45 = vsel %vm40, %v27, 0
    %v48 = vsel %vm40, %v28, 0
    %v51 = vsel %vm40, %v29, 0
    %v54 = vsel %vm40, %v30, 0
    %v57 = vsel %vm40, %v31, 0
    %v60 = vsel %vm40, %v32, 0
    %v63 = vsel %vm40, %v33, 0
    %vm65 = vcmask 1043456
    %v67 = vsel %vm65, %v34, 0
    %69 = vmatprep.subr.mxu0 0.0
    %70 = vmatpush1.msra.mxu0 %v67
    %71 = vmatprep.subr.mxu0 0.0
    %72 = vmatpush1.msra.mxu0 0.0
    %73 = vmatprep.subr.mxu0 0.0
    %74 = vmatpush1.msra.mxu0 0.0
    %75 = vmatprep.subr.mxu0 0.0
    %76 = vmatpush1.msra.mxu0 0.0
    %77 = vmatprep.subr.mxu0 0.0
    %78 = vmatpush1.msra.mxu0 0.0
    %79 = vmatprep.subr.mxu0 0.0
    %80 = vmatpush1.msra.mxu0 0.0
    %81 = vmatprep.subr.mxu0 0.0
    %82 = vmatpush1.msra.mxu0 0.0
    %83 = vmatprep.subr.mxu0 0.0
    %84 = vmatpush1.msra.mxu0 0.0
    %85 = vmatprep.subr.mxu0 0.0
    %86 = vmatpush1.msra.mxu0 0.0
    %87 = vmatprep.subr.mxu0 0.0
    %88 = vmatpush1.msra.mxu0 0.0
    %89 = vmatprep.subr.mxu0 0.0
    %90 = vmatpush1.msra.mxu0 0.0
    %91 = vmatprep.subr.mxu0 0.0
    %92 = vmatpush1.msra.mxu0 0.0
    %93 = vmatprep.subr.mxu0 0.0
    %94 = vmatpush1.msra.mxu0 0.0
    %95 = vmatprep.subr.mxu0 0.0
    %96 = vmatpush1.msra.mxu0 0.0
    %97 = vmatprep.subr.mxu0 0.0
    %98 = vmatpush1.msra.mxu0 0.0
    %99 = vmatprep.subr.mxu0 0.0
    %100 = vmatpush1.msra.mxu0 0.0
    %101 = vmatprep.subr.mxu0 0.0
    %102 = vmatpush1.msra.mxu0 0.0
    %103 = vmatprep.subr.mxu0 0.0
    %104 = vmatpush1.msra.mxu0 0.0
    %105 = vmatprep.subr.mxu0 0.0
    %106 = vmatpush1.msra.mxu0 0.0
    %107 = vmatprep.subr.mxu0 0.0
    %108 = vmatpush1.msra.mxu0 0.0
    %109 = vmatprep.subr.mxu0 0.0
    %110 = vmatpush1.msra.mxu0 0.0
    %111 = vmatprep.subr.mxu0 0.0
    %112 = vmatpush1.msra.mxu0 0.0
    %113 = vmatprep.subr.mxu0 0.0
    %114 = vmatpush1.msra.mxu0 0.0
    %115 = vmatprep.subr.mxu0 0.0
    %116 = vmatpush1.msra.mxu0 0.0
    %117 = vmatprep.subr.mxu0 0.0
    %118 = vmatpush1.msra.mxu0 0.0
    %119 = vmatprep.subr.mxu0 0.0
    %120 = vmatpush1.msra.mxu0 0.0
    %121 = vmatprep.subr.mxu0 0.0
    %122 = vmatpush1.msra.mxu0 0.0
    %123 = vmatprep.subr.mxu0 0.0
    %124 = vmatpush1.msra.mxu0 0.0
    %125 = vmatprep.subr.mxu0 0.0
    %126 = vmatpush1.msra.mxu0 0.0
    %127 = vmatprep.subr.mxu0 0.0
    %128 = vmatpush1.msra.mxu0 0.0
    %129 = vmatprep.subr.mxu0 0.0
    %130 = vmatpush1.msra.mxu0 0.0
    %131 = vmatprep.subr.mxu0 0.0
    %132 = vmatpush1.msra.mxu0 0.0
    %133 = vmatprep.mubr.f32.mxu0 0.0
    %134 = vmatmul.mubr.f32.gmra.mrb[0].mxu0 %v42
    %v135 = vpop.f32.mrb[0].mxu0
    %v136 = vadd.f32 %v39, %v135
    %v137 = vpop.f32.mrb[0].mxu0
    %138 = vmatprep.mubr.f32.mxu0 0.0
    %139 = vmatmul.mubr.f32.gmra.mrb[0].mxu0 %v45
    %v140 = vpop.f32.mrb[0].mxu0
    %v141 = vadd.f32 %v39, %v140
    %v142 = vpop.f32.mrb[0].mxu0
    %143 = vmatprep.mubr.f32.mxu0 0.0
    %144 = vmatmul.mubr.f32.gmra.mrb[0].mxu0 %v48
    %v145 = vpop.f32.mrb[0].mxu0
    %v146 = vadd.f32 %v39, %v145
    %v147 = vpop.f32.mrb[0].mxu0
    %148 = vmatprep.mubr.f32.mxu0 0.0
    %149 = vmatmul.mubr.f32.gmra.mrb[0].mxu0 %v51
    %v150 = vpop.f32.mrb[0].mxu0
    %v151 = vadd.f32 %v39, %v150
    %v152 = vpop.f32.mrb[0].mxu0
    %153 = vmatprep.mubr.f32.mxu0 0.0
    %154 = vmatmul.mubr.f32.gmra.mrb[0].mxu0 %v54
    %v155 = vpop.f32.mrb[0].mxu0
    %v156 = vadd.f32 %v39, %v155
    %v157 = vpop.f32.mrb[0].mxu0
    %158 = vmatprep.mubr.f32.mxu0 0.0
    %159 = vmatmul.mubr.f32.gmra.mrb[0].mxu0 %v57
    %v160 = vpop.f32.mrb[0].mxu0
    %v161 = vadd.f32 %v39, %v160
    %v162 = vpop.f32.mrb[0].mxu0
    %163 = vmatprep.mubr.f32.mxu0 0.0
    %164 = vmatmul.mubr.f32.gmra.mrb[0].mxu0 %v60
    %v165 = vpop.f32.mrb[0].mxu0
    %v166 = vadd.f32 %v39, %v165
    %v167 = vpop.f32.mrb[0].mxu0
    %168 = vmatprep.mubr.f32.mxu0 0.0
    %169 = vmatmul.mubr.f32.gmra.mrb[0].mxu0 %v63
    %v170 = vpop.f32.mrb[0].mxu0
    %v171 = vadd.f32 %v39, %v170
    %v172 = vpop.f32.mrb[0].mxu0
    %173 = vdwg.mxu0
    %v174 = vld [vmem:[%s3] sm:$0xff]
    %v175 = vld [vmem:[%s3 + $0x8] sm:$0xff]
    %v176 = vld [vmem:[%s3 + $0x10] sm:$0xff]
    %v177 = vld [vmem:[%s3 + $0x18] sm:$0xff]
    %v178 = vld [vmem:[%s4 + $0x1] sm:$0x1]
    %v179 = vld [vmem:[%s4 + $0x2] sm:$0x1]
    %v180 = vld [vmem:[%s1] sm:$0xff]
    %vm181 = vcmask 261120
    %v183 = vsel %vm181, %v180, 0
    %185 = vmatprep.subr.mxu0 0.0
    %186 = vmatpush1.msra.mxu0 %v174
    %187 = vmatprep.subr.mxu0 0.0
    %188 = vmatpush1.msra.mxu0 %v175
    %189 = vmatprep.subr.mxu0 0.0
    %190 = vmatpush1.msra.mxu0 %v176
    %191 = vmatprep.subr.mxu0 0.0
    %192 = vmatpush1.msra.mxu0 %v177
    %193 = vmatprep.subr.mxu0 0.0
    %194 = vmatpush1.msra.mxu0 0.0
    %195 = vmatprep.subr.mxu0 0.0
    %196 = vmatpush1.msra.mxu0 0.0
    %197 = vmatprep.subr.mxu0 0.0
    %198 = vmatpush1.msra.mxu0 0.0
    %199 = vmatprep.subr.mxu0 0.0
    %200 = vmatpush1.msra.mxu0 0.0
    %201 = vmatprep.subr.mxu0 0.0
    %202 = vmatpush1.msra.mxu0 0.0
    %203 = vmatprep.subr.mxu0 0.0
    %204 = vmatpush1.msra.mxu0 0.0
    %205 = vmatprep.subr.mxu0 0.0
    %206 = vmatpush1.msra.mxu0 0.0
    %207 = vmatprep.subr.mxu0 0.0
    %208 = vmatpush1.msra.mxu0 0.0
    %209 = vmatprep.subr.mxu0 0.0
    %210 = vmatpush1.msra.mxu0 0.0
    %211 = vmatprep.subr.mxu0 0.0
    %212 = vmatpush1.msra.mxu0 0.0
    %213 = vmatprep.subr.mxu0 0.0
    %214 = vmatpush1.msra.mxu0 0.0
    %215 = vmatprep.subr.mxu0 0.0
    %216 = vmatpush1.msra.mxu0 0.0
    %217 = vmatprep.subr.mxu0 0.0
    %218 = vmatpush1.msra.mxu0 0.0
    %219 = vmatprep.subr.mxu0 0.0
    %220 = vmatpush1.msra.mxu0 0.0
    %221 = vmatprep.subr.mxu0 0.0
    %222 = vmatpush1.msra.mxu0 0.0
    %223 = vmatprep.subr.mxu0 0.0
    %224 = vmatpush1.msra.mxu0 0.0
    %225 = vmatprep.subr.mxu0 0.0
    %226 = vmatpush1.msra.mxu0 0.0
    %227 = vmatprep.subr.mxu0 0.0
    %228 = vmatpush1.msra.mxu0 0.0
    %229 = vmatprep.subr.mxu0 0.0
    %230 = vmatpush1.msra.mxu0 0.0
    %231 = vmatprep.subr.mxu0 0.0
    %232 = vmatpush1.msra.mxu0 0.0
    %233 = vmatprep.subr.mxu0 0.0
    %234 = vmatpush1.msra.mxu0 0.0
    %235 = vmatprep.subr.mxu0 0.0
    %236 = vmatpush1.msra.mxu0 0.0
    %237 = vmatprep.subr.mxu0 0.0
    %238 = vmatpush1.msra.mxu0 0.0
    %239 = vmatprep.subr.mxu0 0.0
    %240 = vmatpush1.msra.mxu0 0.0
    %241 = vmatprep.subr.mxu0 0.0
    %242 = vmatpush1.msra.mxu0 0.0
    %243 = vmatprep.subr.mxu0 0.0
    %244 = vmatpush1.msra.mxu0 0.0
    %245 = vmatprep.subr.mxu0 0.0
    %246 = vmatpush1.msra.mxu0 0.0
    %247 = vmatprep.subr.mxu0 0.0
    %248 = vmatpush1.msra.mxu0 0.0
    %249 = vmatprep.mubr.f32.mxu0 0.0
    %250 = vmatmul.mubr.f32.gmra.mrb[0].mxu0 %v183
    %v251 = vpop.f32.mrb[0].mxu0
    %v252 = vadd.f32 0.0, %v251
    %v253 = vpop.f32.mrb[0].mxu0
    %254 = vdwg.mxu0
    %v255 = vadd.f32 %v136, %v252
    %v256 = vxor.u32 %v255, 2147483648
    %v257 = vmul.f32 %v256, 1.442695
    %v258 = vpow.pop %v257
    %v259 = vadd.f32 %v258, 1.0
    %v260 = vrcp.pop %v259
    %v261 = vmul.f32 1.0, %v260
    %v262 = vlaneseq
    %v263 = vshrl.u32 %v262, 7
    %v264 = vsub.s32 0, %v263
    %v265 = vrot.slane %v178, %v264
    %v266 = vadd.f32 %v252, %v265
    %268 = vrot.lane.b32.xlu0 %v266, 64
    %v269 = vpop.permute.xlu0 %268
    %v271 = vmul.f32 %v261, %v269
    %273 = vrot.lane.b32.xlu0 %v271, 64
    %v274 = vpop.permute.xlu0 %273
    %v276 = vadd.f32 %v136, %v274
    %v277 = vtanh.pop %v276
    %v278 = vsub.f32 1.0, %v261
    %280 = vrot.lane.b32.xlu0 %v277, 96
    %v281 = vpop.permute.xlu0 %280
    %v283 = vmul.f32 %v278, %v281
    %284 = vrot.lane.b32.xlu0 %v180, 32
    %v285 = vpop.permute.xlu0 %284
    %v287 = vmul.f32 %v261, %v285
    %v288 = vadd.f32 %v283, %v287
    %290 = vrot.lane.b32.xlu0 %v288, 96
    %v291 = vpop.permute.xlu0 %290
    %v292 = vsel %vm181, %v291, 0
    %294 = vmatprep.subr.mxu0 0.0
    %295 = vmatpush1.msra.mxu0 %v174
    %296 = vmatprep.subr.mxu0 0.0
    %297 = vmatpush1.msra.mxu0 %v175
    %298 = vmatprep.subr.mxu0 0.0
    %299 = vmatpush1.msra.mxu0 %v176
    %300 = vmatprep.subr.mxu0 0.0
    %301 = vmatpush1.msra.mxu0 %v177
    %302 = vmatprep.subr.mxu0 0.0
    %303 = vmatpush1.msra.mxu0 0.0
    %304 = vmatprep.subr.mxu0 0.0
    %305 = vmatpush1.msra.mxu0 0.0
    %306 = vmatprep.subr.mxu0 0.0
    %307 = vmatpush1.msra.mxu0 0.0
    %308 = vmatprep.subr.mxu0 0.0
    %309 = vmatpush1.msra.mxu0 0.0
    %310 = vmatprep.subr.mxu0 0.0
    %311 = vmatpush1.msra.mxu0 0.0
    %312 = vmatprep.subr.mxu0 0.0
    %313 = vmatpush1.msra.mxu0 0.0
    %314 = vmatprep.subr.mxu0 0.0
    %315 = vmatpush1.msra.mxu0 0.0
    %316 = vmatprep.subr.mxu0 0.0
    %317 = vmatpush1.msra.mxu0 0.0
    %318 = vmatprep.subr.mxu0 0.0
    %319 = vmatpush1.msra.mxu0 0.0
    %320 = vmatprep.subr.mxu0 0.0
    %321 = vmatpush1.msra.mxu0 0.0
    %322 = vmatprep.subr.mxu0 0.0
    %323 = vmatpush1.msra.mxu0 0.0
    %324 = vmatprep.subr.mxu0 0.0
    %325 = vmatpush1.msra.mxu0 0.0
    %326 = vmatprep.subr.mxu0 0.0
    %327 = vmatpush1.msra.mxu0 0.0
    %328 = vmatprep.subr.mxu0 0.0
    %329 = vmatpush1.msra.mxu0 0.0
    %330 = vmatprep.subr.mxu0 0.0
    %331 = vmatpush1.msra.mxu0 0.0
    %332 = vmatprep.subr.mxu0 0.0
    %333 = vmatpush1.msra.mxu0 0.0
    %334 = vmatprep.subr.mxu0 0.0
    %335 = vmatpush1.msra.mxu0 0.0
    %336 = vmatprep.subr.mxu0 0.0
    %337 = vmatpush1.msra.mxu0 0.0
    %338 = vmatprep.subr.mxu0 0.0
    %339 = vmatpush1.msra.mxu0 0.0
    %340 = vmatprep.subr.mxu0 0.0
    %341 = vmatpush1.msra.mxu0 0.0
    %342 = vmatprep.subr.mxu0 0.0
    %343 = vmatpush1.msra.mxu0 0.0
    %344 = vmatprep.subr.mxu0 0.0
    %345 = vmatpush1.msra.mxu0 0.0
    %346 = vmatprep.subr.mxu0 0.0
    %347 = vmatpush1.msra.mxu0 0.0
    %348 = vmatprep.subr.mxu0 0.0
    %349 = vmatpush1.msra.mxu0 0.0
    %350 = vmatprep.subr.mxu0 0.0
    %351 = vmatpush1.msra.mxu0 0.0
    %352 = vmatprep.subr.mxu0 0.0
    %353 = vmatpush1.msra.mxu0 0.0
    %354 = vmatprep.subr.mxu0 0.0
    %355 = vmatpush1.msra.mxu0 0.0
    %356 = vmatprep.subr.mxu0 0.0
    %357 = vmatpush1.msra.mxu0 0.0
    %358 = vmatprep.mubr.f32.mxu0 0.0
    %359 = vmatmul.mubr.f32.gmra.mrb[0].mxu0 %v292
    %v360 = vpop.f32.mrb[0].mxu0
    %v361 = vadd.f32 0.0, %v360
    %v362 = vpop.f32.mrb[0].mxu0
    %363 = vdwg.mxu0
    %v364 = vadd.f32 %v141, %v361
    %v365 = vxor.u32 %v364, 2147483648
    %v366 = vmul.f32 %v365, 1.442695
    %v367 = vpow.pop %v366
    %v368 = vadd.f32 %v367, 1.0
    %v369 = vrcp.pop %v368
    %v370 = vmul.f32 1.0, %v369
    %v371 = vadd.f32 %v361, %v265
    %373 = vrot.lane.b32.xlu0 %v371, 64
    %v374 = vpop.permute.xlu0 %373
    %v376 = vmul.f32 %v370, %v374
    %378 = vrot.lane.b32.xlu0 %v376, 64
    %v379 = vpop.permute.xlu0 %378
    %v381 = vadd.f32 %v141, %v379
    %v382 = vtanh.pop %v381
    %v383 = vsub.f32 1.0, %v370
    %385 = vrot.lane.b32.xlu0 %v382, 96
    %v386 = vpop.permute.xlu0 %385
    %v388 = vmul.f32 %v383, %v386
    %v389 = vmul.f32 %v370, %v288
    %v390 = vadd.f32 %v388, %v389
    %392 = vrot.lane.b32.xlu0 %v390, 96
    %v393 = vpop.permute.xlu0 %392
    %v394 = vsel %vm181, %v393, 0
    %396 = vmatprep.subr.mxu0 0.0
    %397 = vmatpush1.msra.mxu0 %v174
    %398 = vmatprep.subr.mxu0 0.0
    %399 = vmatpush1.msra.mxu0 %v175
    %400 = vmatprep.subr.mxu0 0.0
    %401 = vmatpush1.msra.mxu0 %v176
    %402 = vmatprep.subr.mxu0 0.0
    %403 = vmatpush1.msra.mxu0 %v177
    %404 = vmatprep.subr.mxu0 0.0
    %405 = vmatpush1.msra.mxu0 0.0
    %406 = vmatprep.subr.mxu0 0.0
    %407 = vmatpush1.msra.mxu0 0.0
    %408 = vmatprep.subr.mxu0 0.0
    %409 = vmatpush1.msra.mxu0 0.0
    %410 = vmatprep.subr.mxu0 0.0
    %411 = vmatpush1.msra.mxu0 0.0
    %412 = vmatprep.subr.mxu0 0.0
    %413 = vmatpush1.msra.mxu0 0.0
    %414 = vmatprep.subr.mxu0 0.0
    %415 = vmatpush1.msra.mxu0 0.0
    %416 = vmatprep.subr.mxu0 0.0
    %417 = vmatpush1.msra.mxu0 0.0
    %418 = vmatprep.subr.mxu0 0.0
    %419 = vmatpush1.msra.mxu0 0.0
    %420 = vmatprep.subr.mxu0 0.0
    %421 = vmatpush1.msra.mxu0 0.0
    %422 = vmatprep.subr.mxu0 0.0
    %423 = vmatpush1.msra.mxu0 0.0
    %424 = vmatprep.subr.mxu0 0.0
    %425 = vmatpush1.msra.mxu0 0.0
    %426 = vmatprep.subr.mxu0 0.0
    %427 = vmatpush1.msra.mxu0 0.0
    %428 = vmatprep.subr.mxu0 0.0
    %429 = vmatpush1.msra.mxu0 0.0
    %430 = vmatprep.subr.mxu0 0.0
    %431 = vmatpush1.msra.mxu0 0.0
    %432 = vmatprep.subr.mxu0 0.0
    %433 = vmatpush1.msra.mxu0 0.0
    %434 = vmatprep.subr.mxu0 0.0
    %435 = vmatpush1.msra.mxu0 0.0
    %436 = vmatprep.subr.mxu0 0.0
    %437 = vmatpush1.msra.mxu0 0.0
    %438 = vmatprep.subr.mxu0 0.0
    %439 = vmatpush1.msra.mxu0 0.0
    %440 = vmatprep.subr.mxu0 0.0
    %441 = vmatpush1.msra.mxu0 0.0
    %442 = vmatprep.subr.mxu0 0.0
    %443 = vmatpush1.msra.mxu0 0.0
    %444 = vmatprep.subr.mxu0 0.0
    %445 = vmatpush1.msra.mxu0 0.0
    %446 = vmatprep.subr.mxu0 0.0
    %447 = vmatpush1.msra.mxu0 0.0
    %448 = vmatprep.subr.mxu0 0.0
    %449 = vmatpush1.msra.mxu0 0.0
    %450 = vmatprep.subr.mxu0 0.0
    %451 = vmatpush1.msra.mxu0 0.0
    %452 = vmatprep.subr.mxu0 0.0
    %453 = vmatpush1.msra.mxu0 0.0
    %454 = vmatprep.subr.mxu0 0.0
    %455 = vmatpush1.msra.mxu0 0.0
    %456 = vmatprep.subr.mxu0 0.0
    %457 = vmatpush1.msra.mxu0 0.0
    %458 = vmatprep.subr.mxu0 0.0
    %459 = vmatpush1.msra.mxu0 0.0
    %460 = vmatprep.mubr.f32.mxu0 0.0
    %461 = vmatmul.mubr.f32.gmra.mrb[0].mxu0 %v394
    %v462 = vpop.f32.mrb[0].mxu0
    %v463 = vadd.f32 0.0, %v462
    %v464 = vpop.f32.mrb[0].mxu0
    %465 = vdwg.mxu0
    %v466 = vadd.f32 %v146, %v463
    %v467 = vxor.u32 %v466, 2147483648
    %v468 = vmul.f32 %v467, 1.442695
    %v469 = vpow.pop %v468
    %v470 = vadd.f32 %v469, 1.0
    %v471 = vrcp.pop %v470
    %v472 = vmul.f32 1.0, %v471
    %v473 = vadd.f32 %v463, %v265
    %475 = vrot.lane.b32.xlu0 %v473, 64
    %v476 = vpop.permute.xlu0 %475
    %v478 = vmul.f32 %v472, %v476
    %480 = vrot.lane.b32.xlu0 %v478, 64
    %v481 = vpop.permute.xlu0 %480
    %v483 = vadd.f32 %v146, %v481
    %v484 = vtanh.pop %v483
    %v485 = vsub.f32 1.0, %v472
    %487 = vrot.lane.b32.xlu0 %v484, 96
    %v488 = vpop.permute.xlu0 %487
    %v490 = vmul.f32 %v485, %v488
    %v491 = vmul.f32 %v472, %v390
    %v492 = vadd.f32 %v490, %v491
    %494 = vrot.lane.b32.xlu0 %v492, 96
    %v495 = vpop.permute.xlu0 %494
    %v496 = vsel %vm181, %v495, 0
    %498 = vmatprep.subr.mxu0 0.0
    %499 = vmatpush1.msra.mxu0 %v174
    %500 = vmatprep.subr.mxu0 0.0
    %501 = vmatpush1.msra.mxu0 %v175
    %502 = vmatprep.subr.mxu0 0.0
    %503 = vmatpush1.msra.mxu0 %v176
    %504 = vmatprep.subr.mxu0 0.0
    %505 = vmatpush1.msra.mxu0 %v177
    %506 = vmatprep.subr.mxu0 0.0
    %507 = vmatpush1.msra.mxu0 0.0
    %508 = vmatprep.subr.mxu0 0.0
    %509 = vmatpush1.msra.mxu0 0.0
    %510 = vmatprep.subr.mxu0 0.0
    %511 = vmatpush1.msra.mxu0 0.0
    %512 = vmatprep.subr.mxu0 0.0
    %513 = vmatpush1.msra.mxu0 0.0
    %514 = vmatprep.subr.mxu0 0.0
    %515 = vmatpush1.msra.mxu0 0.0
    %516 = vmatprep.subr.mxu0 0.0
    %517 = vmatpush1.msra.mxu0 0.0
    %518 = vmatprep.subr.mxu0 0.0
    %519 = vmatpush1.msra.mxu0 0.0
    %520 = vmatprep.subr.mxu0 0.0
    %521 = vmatpush1.msra.mxu0 0.0
    %522 = vmatprep.subr.mxu0 0.0
    %523 = vmatpush1.msra.mxu0 0.0
    %524 = vmatprep.subr.mxu0 0.0
    %525 = vmatpush1.msra.mxu0 0.0
    %526 = vmatprep.subr.mxu0 0.0
    %527 = vmatpush1.msra.mxu0 0.0
    %528 = vmatprep.subr.mxu0 0.0
    %529 = vmatpush1.msra.mxu0 0.0
    %530 = vmatprep.subr.mxu0 0.0
    %531 = vmatpush1.msra.mxu0 0.0
    %532 = vmatprep.subr.mxu0 0.0
    %533 = vmatpush1.msra.mxu0 0.0
    %534 = vmatprep.subr.mxu0 0.0
    %535 = vmatpush1.msra.mxu0 0.0
    %536 = vmatprep.subr.mxu0 0.0
    %537 = vmatpush1.msra.mxu0 0.0
    %538 = vmatprep.subr.mxu0 0.0
    %539 = vmatpush1.msra.mxu0 0.0
    %540 = vmatprep.subr.mxu0 0.0
    %541 = vmatpush1.msra.mxu0 0.0
    %542 = vmatprep.subr.mxu0 0.0
    %543 = vmatpush1.msra.mxu0 0.0
    %544 = vmatprep.subr.mxu0 0.0
    %545 = vmatpush1.msra.mxu0 0.0
    %546 = vmatprep.subr.mxu0 0.0
    %547 = vmatpush1.msra.mxu0 0.0
    %548 = vmatprep.subr.mxu0 0.0
    %549 = vmatpush1.msra.mxu0 0.0
    %550 = vmatprep.subr.mxu0 0.0
    %551 = vmatpush1.msra.mxu0 0.0
    %552 = vmatprep.subr.mxu0 0.0
    %553 = vmatpush1.msra.mxu0 0.0
    %554 = vmatprep.subr.mxu0 0.0
    %555 = vmatpush1.msra.mxu0 0.0
    %556 = vmatprep.subr.mxu0 0.0
    %557 = vmatpush1.msra.mxu0 0.0
    %558 = vmatprep.subr.mxu0 0.0
    %559 = vmatpush1.msra.mxu0 0.0
    %560 = vmatprep.subr.mxu0 0.0
    %561 = vmatpush1.msra.mxu0 0.0
    %562 = vmatprep.mubr.f32.mxu0 0.0
    %563 = vmatmul.mubr.f32.gmra.mrb[0].mxu0 %v496
    %v564 = vpop.f32.mrb[0].mxu0
    %v565 = vadd.f32 0.0, %v564
    %v566 = vpop.f32.mrb[0].mxu0
    %567 = vdwg.mxu0
    %v568 = vadd.f32 %v151, %v565
    %v569 = vxor.u32 %v568, 2147483648
    %v570 = vmul.f32 %v569, 1.442695
    %v571 = vpow.pop %v570
    %v572 = vadd.f32 %v571, 1.0
    %v573 = vrcp.pop %v572
    %v574 = vmul.f32 1.0, %v573
    %v575 = vadd.f32 %v565, %v265
    %577 = vrot.lane.b32.xlu0 %v575, 64
    %v578 = vpop.permute.xlu0 %577
    %v580 = vmul.f32 %v574, %v578
    %582 = vrot.lane.b32.xlu0 %v580, 64
    %v583 = vpop.permute.xlu0 %582
    %v585 = vadd.f32 %v151, %v583
    %v586 = vtanh.pop %v585
    %v587 = vsub.f32 1.0, %v574
    %589 = vrot.lane.b32.xlu0 %v586, 96
    %v590 = vpop.permute.xlu0 %589
    %v592 = vmul.f32 %v587, %v590
    %v593 = vmul.f32 %v574, %v492
    %v594 = vadd.f32 %v592, %v593
    %596 = vrot.lane.b32.xlu0 %v594, 96
    %v597 = vpop.permute.xlu0 %596
    %v598 = vsel %vm181, %v597, 0
    %600 = vmatprep.subr.mxu0 0.0
    %601 = vmatpush1.msra.mxu0 %v174
    %602 = vmatprep.subr.mxu0 0.0
    %603 = vmatpush1.msra.mxu0 %v175
    %604 = vmatprep.subr.mxu0 0.0
    %605 = vmatpush1.msra.mxu0 %v176
    %606 = vmatprep.subr.mxu0 0.0
    %607 = vmatpush1.msra.mxu0 %v177
    %608 = vmatprep.subr.mxu0 0.0
    %609 = vmatpush1.msra.mxu0 0.0
    %610 = vmatprep.subr.mxu0 0.0
    %611 = vmatpush1.msra.mxu0 0.0
    %612 = vmatprep.subr.mxu0 0.0
    %613 = vmatpush1.msra.mxu0 0.0
    %614 = vmatprep.subr.mxu0 0.0
    %615 = vmatpush1.msra.mxu0 0.0
    %616 = vmatprep.subr.mxu0 0.0
    %617 = vmatpush1.msra.mxu0 0.0
    %618 = vmatprep.subr.mxu0 0.0
    %619 = vmatpush1.msra.mxu0 0.0
    %620 = vmatprep.subr.mxu0 0.0
    %621 = vmatpush1.msra.mxu0 0.0
    %622 = vmatprep.subr.mxu0 0.0
    %623 = vmatpush1.msra.mxu0 0.0
    %624 = vmatprep.subr.mxu0 0.0
    %625 = vmatpush1.msra.mxu0 0.0
    %626 = vmatprep.subr.mxu0 0.0
    %627 = vmatpush1.msra.mxu0 0.0
    %628 = vmatprep.subr.mxu0 0.0
    %629 = vmatpush1.msra.mxu0 0.0
    %630 = vmatprep.subr.mxu0 0.0
    %631 = vmatpush1.msra.mxu0 0.0
    %632 = vmatprep.subr.mxu0 0.0
    %633 = vmatpush1.msra.mxu0 0.0
    %634 = vmatprep.subr.mxu0 0.0
    %635 = vmatpush1.msra.mxu0 0.0
    %636 = vmatprep.subr.mxu0 0.0
    %637 = vmatpush1.msra.mxu0 0.0
    %638 = vmatprep.subr.mxu0 0.0
    %639 = vmatpush1.msra.mxu0 0.0
    %640 = vmatprep.subr.mxu0 0.0
    %641 = vmatpush1.msra.mxu0 0.0
    %642 = vmatprep.subr.mxu0 0.0
    %643 = vmatpush1.msra.mxu0 0.0
    %644 = vmatprep.subr.mxu0 0.0
    %645 = vmatpush1.msra.mxu0 0.0
    %646 = vmatprep.subr.mxu0 0.0
    %647 = vmatpush1.msra.mxu0 0.0
    %648 = vmatprep.subr.mxu0 0.0
    %649 = vmatpush1.msra.mxu0 0.0
    %650 = vmatprep.subr.mxu0 0.0
    %651 = vmatpush1.msra.mxu0 0.0
    %652 = vmatprep.subr.mxu0 0.0
    %653 = vmatpush1.msra.mxu0 0.0
    %654 = vmatprep.subr.mxu0 0.0
    %655 = vmatpush1.msra.mxu0 0.0
    %656 = vmatprep.subr.mxu0 0.0
    %657 = vmatpush1.msra.mxu0 0.0
    %658 = vmatprep.subr.mxu0 0.0
    %659 = vmatpush1.msra.mxu0 0.0
    %660 = vmatprep.subr.mxu0 0.0
    %661 = vmatpush1.msra.mxu0 0.0
    %662 = vmatprep.subr.mxu0 0.0
    %663 = vmatpush1.msra.mxu0 0.0
    %664 = vmatprep.mubr.f32.mxu0 0.0
    %665 = vmatmul.mubr.f32.gmra.mrb[0].mxu0 %v598
    %v666 = vpop.f32.mrb[0].mxu0
    %v667 = vadd.f32 0.0, %v666
    %v668 = vpop.f32.mrb[0].mxu0
    %669 = vdwg.mxu0
    %v670 = vadd.f32 %v156, %v667
    %v671 = vxor.u32 %v670, 2147483648
    %v672 = vmul.f32 %v671, 1.442695
    %v673 = vpow.pop %v672
    %v674 = vadd.f32 %v673, 1.0
    %v675 = vrcp.pop %v674
    %v676 = vmul.f32 1.0, %v675
    %v677 = vadd.f32 %v667, %v265
    %679 = vrot.lane.b32.xlu0 %v677, 64
    %v680 = vpop.permute.xlu0 %679
    %v682 = vmul.f32 %v676, %v680
    %684 = vrot.lane.b32.xlu0 %v682, 64
    %v685 = vpop.permute.xlu0 %684
    %v687 = vadd.f32 %v156, %v685
    %v688 = vtanh.pop %v687
    %v689 = vsub.f32 1.0, %v676
    %691 = vrot.lane.b32.xlu0 %v688, 96
    %v692 = vpop.permute.xlu0 %691
    %v694 = vmul.f32 %v689, %v692
    %v695 = vmul.f32 %v676, %v594
    %v696 = vadd.f32 %v694, %v695
    %698 = vrot.lane.b32.xlu0 %v696, 96
    %v699 = vpop.permute.xlu0 %698
    %v700 = vsel %vm181, %v699, 0
    %702 = vmatprep.subr.mxu0 0.0
    %703 = vmatpush1.msra.mxu0 %v174
    %704 = vmatprep.subr.mxu0 0.0
    %705 = vmatpush1.msra.mxu0 %v175
    %706 = vmatprep.subr.mxu0 0.0
    %707 = vmatpush1.msra.mxu0 %v176
    %708 = vmatprep.subr.mxu0 0.0
    %709 = vmatpush1.msra.mxu0 %v177
    %710 = vmatprep.subr.mxu0 0.0
    %711 = vmatpush1.msra.mxu0 0.0
    %712 = vmatprep.subr.mxu0 0.0
    %713 = vmatpush1.msra.mxu0 0.0
    %714 = vmatprep.subr.mxu0 0.0
    %715 = vmatpush1.msra.mxu0 0.0
    %716 = vmatprep.subr.mxu0 0.0
    %717 = vmatpush1.msra.mxu0 0.0
    %718 = vmatprep.subr.mxu0 0.0
    %719 = vmatpush1.msra.mxu0 0.0
    %720 = vmatprep.subr.mxu0 0.0
    %721 = vmatpush1.msra.mxu0 0.0
    %722 = vmatprep.subr.mxu0 0.0
    %723 = vmatpush1.msra.mxu0 0.0
    %724 = vmatprep.subr.mxu0 0.0
    %725 = vmatpush1.msra.mxu0 0.0
    %726 = vmatprep.subr.mxu0 0.0
    %727 = vmatpush1.msra.mxu0 0.0
    %728 = vmatprep.subr.mxu0 0.0
    %729 = vmatpush1.msra.mxu0 0.0
    %730 = vmatprep.subr.mxu0 0.0
    %731 = vmatpush1.msra.mxu0 0.0
    %732 = vmatprep.subr.mxu0 0.0
    %733 = vmatpush1.msra.mxu0 0.0
    %734 = vmatprep.subr.mxu0 0.0
    %735 = vmatpush1.msra.mxu0 0.0
    %736 = vmatprep.subr.mxu0 0.0
    %737 = vmatpush1.msra.mxu0 0.0
    %738 = vmatprep.subr.mxu0 0.0
    %739 = vmatpush1.msra.mxu0 0.0
    %740 = vmatprep.subr.mxu0 0.0
    %741 = vmatpush1.msra.mxu0 0.0
    %742 = vmatprep.subr.mxu0 0.0
    %743 = vmatpush1.msra.mxu0 0.0
    %744 = vmatprep.subr.mxu0 0.0
    %745 = vmatpush1.msra.mxu0 0.0
    %746 = vmatprep.subr.mxu0 0.0
    %747 = vmatpush1.msra.mxu0 0.0
    %748 = vmatprep.subr.mxu0 0.0
    %749 = vmatpush1.msra.mxu0 0.0
    %750 = vmatprep.subr.mxu0 0.0
    %751 = vmatpush1.msra.mxu0 0.0
    %752 = vmatprep.subr.mxu0 0.0
    %753 = vmatpush1.msra.mxu0 0.0
    %754 = vmatprep.subr.mxu0 0.0
    %755 = vmatpush1.msra.mxu0 0.0
    %756 = vmatprep.subr.mxu0 0.0
    %757 = vmatpush1.msra.mxu0 0.0
    %758 = vmatprep.subr.mxu0 0.0
    %759 = vmatpush1.msra.mxu0 0.0
    %760 = vmatprep.subr.mxu0 0.0
    %761 = vmatpush1.msra.mxu0 0.0
    %762 = vmatprep.subr.mxu0 0.0
    %763 = vmatpush1.msra.mxu0 0.0
    %764 = vmatprep.subr.mxu0 0.0
    %765 = vmatpush1.msra.mxu0 0.0
    %766 = vmatprep.mubr.f32.mxu0 0.0
    %767 = vmatmul.mubr.f32.gmra.mrb[0].mxu0 %v700
    %v768 = vpop.f32.mrb[0].mxu0
    %v769 = vadd.f32 0.0, %v768
    %v770 = vpop.f32.mrb[0].mxu0
    %771 = vdwg.mxu0
    %v772 = vadd.f32 %v161, %v769
    %v773 = vxor.u32 %v772, 2147483648
    %v774 = vmul.f32 %v773, 1.442695
    %v775 = vpow.pop %v774
    %v776 = vadd.f32 %v775, 1.0
    %v777 = vrcp.pop %v776
    %v778 = vmul.f32 1.0, %v777
    %v779 = vadd.f32 %v769, %v265
    %781 = vrot.lane.b32.xlu0 %v779, 64
    %v782 = vpop.permute.xlu0 %781
    %v784 = vmul.f32 %v778, %v782
    %786 = vrot.lane.b32.xlu0 %v784, 64
    %v787 = vpop.permute.xlu0 %786
    %v789 = vadd.f32 %v161, %v787
    %v790 = vtanh.pop %v789
    %v791 = vsub.f32 1.0, %v778
    %793 = vrot.lane.b32.xlu0 %v790, 96
    %v794 = vpop.permute.xlu0 %793
    %v796 = vmul.f32 %v791, %v794
    %v797 = vmul.f32 %v778, %v696
    %v798 = vadd.f32 %v796, %v797
    %800 = vrot.lane.b32.xlu0 %v798, 96
    %v801 = vpop.permute.xlu0 %800
    %v802 = vsel %vm181, %v801, 0
    %804 = vmatprep.subr.mxu0 0.0
    %805 = vmatpush1.msra.mxu0 %v174
    %806 = vmatprep.subr.mxu0 0.0
    %807 = vmatpush1.msra.mxu0 %v175
    %808 = vmatprep.subr.mxu0 0.0
    %809 = vmatpush1.msra.mxu0 %v176
    %810 = vmatprep.subr.mxu0 0.0
    %811 = vmatpush1.msra.mxu0 %v177
    %812 = vmatprep.subr.mxu0 0.0
    %813 = vmatpush1.msra.mxu0 0.0
    %814 = vmatprep.subr.mxu0 0.0
    %815 = vmatpush1.msra.mxu0 0.0
    %816 = vmatprep.subr.mxu0 0.0
    %817 = vmatpush1.msra.mxu0 0.0
    %818 = vmatprep.subr.mxu0 0.0
    %819 = vmatpush1.msra.mxu0 0.0
    %820 = vmatprep.subr.mxu0 0.0
    %821 = vmatpush1.msra.mxu0 0.0
    %822 = vmatprep.subr.mxu0 0.0
    %823 = vmatpush1.msra.mxu0 0.0
    %824 = vmatprep.subr.mxu0 0.0
    %825 = vmatpush1.msra.mxu0 0.0
    %826 = vmatprep.subr.mxu0 0.0
    %827 = vmatpush1.msra.mxu0 0.0
    %828 = vmatprep.subr.mxu0 0.0
    %829 = vmatpush1.msra.mxu0 0.0
    %830 = vmatprep.subr.mxu0 0.0
    %831 = vmatpush1.msra.mxu0 0.0
    %832 = vmatprep.subr.mxu0 0.0
    %833 = vmatpush1.msra.mxu0 0.0
    %834 = vmatprep.subr.mxu0 0.0
    %835 = vmatpush1.msra.mxu0 0.0
    %836 = vmatprep.subr.mxu0 0.0
    %837 = vmatpush1.msra.mxu0 0.0
    %838 = vmatprep.subr.mxu0 0.0
    %839 = vmatpush1.msra.mxu0 0.0
    %840 = vmatprep.subr.mxu0 0.0
    %841 = vmatpush1.msra.mxu0 0.0
    %842 = vmatprep.subr.mxu0 0.0
    %843 = vmatpush1.msra.mxu0 0.0
    %844 = vmatprep.subr.mxu0 0.0
    %845 = vmatpush1.msra.mxu0 0.0
    %846 = vmatprep.subr.mxu0 0.0
    %847 = vmatpush1.msra.mxu0 0.0
    %848 = vmatprep.subr.mxu0 0.0
    %849 = vmatpush1.msra.mxu0 0.0
    %850 = vmatprep.subr.mxu0 0.0
    %851 = vmatpush1.msra.mxu0 0.0
    %852 = vmatprep.subr.mxu0 0.0
    %853 = vmatpush1.msra.mxu0 0.0
    %854 = vmatprep.subr.mxu0 0.0
    %855 = vmatpush1.msra.mxu0 0.0
    %856 = vmatprep.subr.mxu0 0.0
    %857 = vmatpush1.msra.mxu0 0.0
    %858 = vmatprep.subr.mxu0 0.0
    %859 = vmatpush1.msra.mxu0 0.0
    %860 = vmatprep.subr.mxu0 0.0
    %861 = vmatpush1.msra.mxu0 0.0
    %862 = vmatprep.subr.mxu0 0.0
    %863 = vmatpush1.msra.mxu0 0.0
    %864 = vmatprep.subr.mxu0 0.0
    %865 = vmatpush1.msra.mxu0 0.0
    %866 = vmatprep.subr.mxu0 0.0
    %867 = vmatpush1.msra.mxu0 0.0
    %868 = vmatprep.mubr.f32.mxu0 0.0
    %869 = vmatmul.mubr.f32.gmra.mrb[0].mxu0 %v802
    %v870 = vpop.f32.mrb[0].mxu0
    %v871 = vadd.f32 0.0, %v870
    %v872 = vpop.f32.mrb[0].mxu0
    %873 = vdwg.mxu0
    %v874 = vadd.f32 %v166, %v871
    %v875 = vxor.u32 %v874, 2147483648
    %v876 = vmul.f32 %v875, 1.442695
    %v877 = vpow.pop %v876
    %v878 = vadd.f32 %v877, 1.0
    %v879 = vrcp.pop %v878
    %v880 = vmul.f32 1.0, %v879
    %v881 = vadd.f32 %v871, %v265
    %883 = vrot.lane.b32.xlu0 %v881, 64
    %v884 = vpop.permute.xlu0 %883
    %v886 = vmul.f32 %v880, %v884
    %888 = vrot.lane.b32.xlu0 %v886, 64
    %v889 = vpop.permute.xlu0 %888
    %v891 = vadd.f32 %v166, %v889
    %v892 = vtanh.pop %v891
    %v893 = vsub.f32 1.0, %v880
    %895 = vrot.lane.b32.xlu0 %v892, 96
    %v896 = vpop.permute.xlu0 %895
    %v898 = vmul.f32 %v893, %v896
    %v899 = vmul.f32 %v880, %v798
    %v900 = vadd.f32 %v898, %v899
    %902 = vrot.lane.b32.xlu0 %v900, 96
    %v903 = vpop.permute.xlu0 %902
    %v904 = vsel %vm181, %v903, 0
    %906 = vmatprep.subr.mxu0 0.0
    %907 = vmatpush1.msra.mxu0 %v174
    %908 = vmatprep.subr.mxu0 0.0
    %909 = vmatpush1.msra.mxu0 %v175
    %910 = vmatprep.subr.mxu0 0.0
    %911 = vmatpush1.msra.mxu0 %v176
    %912 = vmatprep.subr.mxu0 0.0
    %913 = vmatpush1.msra.mxu0 %v177
    %914 = vmatprep.subr.mxu0 0.0
    %915 = vmatpush1.msra.mxu0 0.0
    %916 = vmatprep.subr.mxu0 0.0
    %917 = vmatpush1.msra.mxu0 0.0
    %918 = vmatprep.subr.mxu0 0.0
    %919 = vmatpush1.msra.mxu0 0.0
    %920 = vmatprep.subr.mxu0 0.0
    %921 = vmatpush1.msra.mxu0 0.0
    %922 = vmatprep.subr.mxu0 0.0
    %923 = vmatpush1.msra.mxu0 0.0
    %924 = vmatprep.subr.mxu0 0.0
    %925 = vmatpush1.msra.mxu0 0.0
    %926 = vmatprep.subr.mxu0 0.0
    %927 = vmatpush1.msra.mxu0 0.0
    %928 = vmatprep.subr.mxu0 0.0
    %929 = vmatpush1.msra.mxu0 0.0
    %930 = vmatprep.subr.mxu0 0.0
    %931 = vmatpush1.msra.mxu0 0.0
    %932 = vmatprep.subr.mxu0 0.0
    %933 = vmatpush1.msra.mxu0 0.0
    %934 = vmatprep.subr.mxu0 0.0
    %935 = vmatpush1.msra.mxu0 0.0
    %936 = vmatprep.subr.mxu0 0.0
    %937 = vmatpush1.msra.mxu0 0.0
    %938 = vmatprep.subr.mxu0 0.0
    %939 = vmatpush1.msra.mxu0 0.0
    %940 = vmatprep.subr.mxu0 0.0
    %941 = vmatpush1.msra.mxu0 0.0
    %942 = vmatprep.subr.mxu0 0.0
    %943 = vmatpush1.msra.mxu0 0.0
    %944 = vmatprep.subr.mxu0 0.0
    %945 = vmatpush1.msra.mxu0 0.0
    %946 = vmatprep.subr.mxu0 0.0
    %947 = vmatpush1.msra.mxu0 0.0
    %948 = vmatprep.subr.mxu0 0.0
    %949 = vmatpush1.msra.mxu0 0.0
    %950 = vmatprep.subr.mxu0 0.0
    %951 = vmatpush1.msra.mxu0 0.0
    %952 = vmatprep.subr.mxu0 0.0
    %953 = vmatpush1.msra.mxu0 0.0
    %954 = vmatprep.subr.mxu0 0.0
    %955 = vmatpush1.msra.mxu0 0.0
    %956 = vmatprep.subr.mxu0 0.0
    %957 = vmatpush1.msra.mxu0 0.0
    %958 = vmatprep.subr.mxu0 0.0
    %959 = vmatpush1.msra.mxu0 0.0
    %960 = vmatprep.subr.mxu0 0.0
    %961 = vmatpush1.msra.mxu0 0.0
    %962 = vmatprep.subr.mxu0 0.0
    %963 = vmatpush1.msra.mxu0 0.0
    %964 = vmatprep.subr.mxu0 0.0
    %965 = vmatpush1.msra.mxu0 0.0
    %966 = vmatprep.subr.mxu0 0.0
    %967 = vmatpush1.msra.mxu0 0.0
    %968 = vmatprep.subr.mxu0 0.0
    %969 = vmatpush1.msra.mxu0 0.0
    %970 = vmatprep.mubr.f32.mxu0 0.0
    %971 = vmatmul.mubr.f32.gmra.mrb[0].mxu0 %v904
    %v972 = vpop.f32.mrb[0].mxu0
    %v973 = vadd.f32 0.0, %v972
    %v974 = vpop.f32.mrb[0].mxu0
    %975 = vdwg.mxu0
    %v976 = vadd.f32 %v171, %v973
    %v977 = vxor.u32 %v976, 2147483648
    %v978 = vmul.f32 %v977, 1.442695
    %v979 = vpow.pop %v978
    %v980 = vadd.f32 %v979, 1.0
    %v981 = vrcp.pop %v980
    %v982 = vmul.f32 1.0, %v981
    %v983 = vadd.f32 %v973, %v265
    %985 = vrot.lane.b32.xlu0 %v983, 64
    %v986 = vpop.permute.xlu0 %985
    %v988 = vmul.f32 %v982, %v986
    %990 = vrot.lane.b32.xlu0 %v988, 64
    %v991 = vpop.permute.xlu0 %990
    %v993 = vadd.f32 %v171, %v991
    %v994 = vtanh.pop %v993
    %v995 = vsub.f32 1.0, %v982
    %997 = vrot.lane.b32.xlu0 %v994, 96
    %v998 = vpop.permute.xlu0 %997
    %v1000 = vmul.f32 %v995, %v998
    %v1001 = vmul.f32 %v982, %v900
    %v1002 = vadd.f32 %v1000, %v1001
    %v1003 = vld [vmem:[%s5] sm:$0xff]
    %v1004 = vld [vmem:[%s5 + $0x8] sm:$0xff]
    %v1005 = vld [vmem:[%s5 + $0x10] sm:$0xff]
    %v1006 = vld [vmem:[%s5 + $0x18] sm:$0xff]
    %v1007 = vlaneseq
    %v1008 = vshrl.u32 %v1007, 7
    %v1009 = vsub.s32 0, %v1008
    %v1010 = vrot.slane %v179, %v1009
    %1012 = vrot.lane.b32.xlu0 %v1002, 96
    %v1013 = vpop.permute.xlu0 %1012
    %v1014 = vsel %vm181, %v1013, 0
    %1016 = vmatprep.subr.mxu0 0.0
    %1017 = vmatpush1.msra.mxu0 %v1003
    %1018 = vmatprep.subr.mxu0 0.0
    %1019 = vmatpush1.msra.mxu0 %v1004
    %1020 = vmatprep.subr.mxu0 0.0
    %1021 = vmatpush1.msra.mxu0 %v1005
    %1022 = vmatprep.subr.mxu0 0.0
    %1023 = vmatpush1.msra.mxu0 %v1006
    %1024 = vmatprep.subr.mxu0 0.0
    %1025 = vmatpush1.msra.mxu0 0.0
    %1026 = vmatprep.subr.mxu0 0.0
    %1027 = vmatpush1.msra.mxu0 0.0
    %1028 = vmatprep.subr.mxu0 0.0
    %1029 = vmatpush1.msra.mxu0 0.0
    %1030 = vmatprep.subr.mxu0 0.0
    %1031 = vmatpush1.msra.mxu0 0.0
    %1032 = vmatprep.subr.mxu0 0.0
    %1033 = vmatpush1.msra.mxu0 0.0
    %1034 = vmatprep.subr.mxu0 0.0
    %1035 = vmatpush1.msra.mxu0 0.0
    %1036 = vmatprep.subr.mxu0 0.0
    %1037 = vmatpush1.msra.mxu0 0.0
    %1038 = vmatprep.subr.mxu0 0.0
    %1039 = vmatpush1.msra.mxu0 0.0
    %1040 = vmatprep.subr.mxu0 0.0
    %1041 = vmatpush1.msra.mxu0 0.0
    %1042 = vmatprep.subr.mxu0 0.0
    %1043 = vmatpush1.msra.mxu0 0.0
    %1044 = vmatprep.subr.mxu0 0.0
    %1045 = vmatpush1.msra.mxu0 0.0
    %1046 = vmatprep.subr.mxu0 0.0
    %1047 = vmatpush1.msra.mxu0 0.0
    %1048 = vmatprep.subr.mxu0 0.0
    %1049 = vmatpush1.msra.mxu0 0.0
    %1050 = vmatprep.subr.mxu0 0.0
    %1051 = vmatpush1.msra.mxu0 0.0
    %1052 = vmatprep.subr.mxu0 0.0
    %1053 = vmatpush1.msra.mxu0 0.0
    %1054 = vmatprep.subr.mxu0 0.0
    %1055 = vmatpush1.msra.mxu0 0.0
    %1056 = vmatprep.subr.mxu0 0.0
    %1057 = vmatpush1.msra.mxu0 0.0
    %1058 = vmatprep.subr.mxu0 0.0
    %1059 = vmatpush1.msra.mxu0 0.0
    %1060 = vmatprep.subr.mxu0 0.0
    %1061 = vmatpush1.msra.mxu0 0.0
    %1062 = vmatprep.subr.mxu0 0.0
    %1063 = vmatpush1.msra.mxu0 0.0
    %1064 = vmatprep.subr.mxu0 0.0
    %1065 = vmatpush1.msra.mxu0 0.0
    %1066 = vmatprep.subr.mxu0 0.0
    %1067 = vmatpush1.msra.mxu0 0.0
    %1068 = vmatprep.subr.mxu0 0.0
    %1069 = vmatpush1.msra.mxu0 0.0
    %1070 = vmatprep.subr.mxu0 0.0
    %1071 = vmatpush1.msra.mxu0 0.0
    %1072 = vmatprep.subr.mxu0 0.0
    %1073 = vmatpush1.msra.mxu0 0.0
    %1074 = vmatprep.subr.mxu0 0.0
    %1075 = vmatpush1.msra.mxu0 0.0
    %1076 = vmatprep.subr.mxu0 0.0
    %1077 = vmatpush1.msra.mxu0 0.0
    %1078 = vmatprep.subr.mxu0 0.0
    %1079 = vmatpush1.msra.mxu0 0.0
    %1080 = vmatprep.mubr.f32.mxu0 0.0
    %1081 = vmatmul.mubr.f32.gmra.mrb[0].mxu0 %v292
    %v1082 = vpop.f32.mrb[0].mxu0
    %v1083 = vadd.f32 %v1010, %v1082
    %v1084 = vpop.f32.mrb[0].mxu0
    %1085 = vmatprep.mubr.f32.mxu0 0.0
    %1086 = vmatmul.mubr.f32.gmra.mrb[0].mxu0 %v394
    %v1087 = vpop.f32.mrb[0].mxu0
    %v1088 = vadd.f32 %v1010, %v1087
    %v1089 = vpop.f32.mrb[0].mxu0
    %1090 = vmatprep.mubr.f32.mxu0 0.0
    %1091 = vmatmul.mubr.f32.gmra.mrb[0].mxu0 %v496
    %v1092 = vpop.f32.mrb[0].mxu0
    %v1093 = vadd.f32 %v1010, %v1092
    %v1094 = vpop.f32.mrb[0].mxu0
    %1095 = vmatprep.mubr.f32.mxu0 0.0
    %1096 = vmatmul.mubr.f32.gmra.mrb[0].mxu0 %v598
    %v1097 = vpop.f32.mrb[0].mxu0
    %v1098 = vadd.f32 %v1010, %v1097
    %v1099 = vpop.f32.mrb[0].mxu0
    %1100 = vmatprep.mubr.f32.mxu0 0.0
    %1101 = vmatmul.mubr.f32.gmra.mrb[0].mxu0 %v700
    %v1102 = vpop.f32.mrb[0].mxu0
    %v1103 = vadd.f32 %v1010, %v1102
    %v1104 = vpop.f32.mrb[0].mxu0
    %1105 = vmatprep.mubr.f32.mxu0 0.0
    %1106 = vmatmul.mubr.f32.gmra.mrb[0].mxu0 %v802
    %v1107 = vpop.f32.mrb[0].mxu0
    %v1108 = vadd.f32 %v1010, %v1107
    %v1109 = vpop.f32.mrb[0].mxu0
    %1110 = vmatprep.mubr.f32.mxu0 0.0
    %1111 = vmatmul.mubr.f32.gmra.mrb[0].mxu0 %v904
    %v1112 = vpop.f32.mrb[0].mxu0
    %v1113 = vadd.f32 %v1010, %v1112
    %v1114 = vpop.f32.mrb[0].mxu0
    %1115 = vmatprep.mubr.f32.mxu0 0.0
    %1116 = vmatmul.mubr.f32.gmra.mrb[0].mxu0 %v1014
    %v1117 = vpop.f32.mrb[0].mxu0
    %v1118 = vadd.f32 %v1010, %v1117
    %v1119 = vpop.f32.mrb[0].mxu0
    %1120 = vdwg.mxu0
    %1121 = vst.msk [vmem:[%s6] sm:$0xff] %vm40, %v1083
    %1122 = vst.msk [vmem:[%s6 + $0x8] sm:$0xff] %vm40, %v1088
    %1123 = vst.msk [vmem:[%s6 + $0x10] sm:$0xff] %vm40, %v1093
    %1124 = vst.msk [vmem:[%s6 + $0x18] sm:$0xff] %vm40, %v1098
    %1125 = vst.msk [vmem:[%s6 + $0x20] sm:$0xff] %vm40, %v1103
    %1126 = vst.msk [vmem:[%s6 + $0x28] sm:$0xff] %vm40, %v1108
    %1127 = vst.msk [vmem:[%s6 + $0x30] sm:$0xff] %vm40, %v1113
    %1128 = vst.msk [vmem:[%s6 + $0x38] sm:$0xff] %vm40, %v1118
    %1130 = vst.msk [vmem:[#allocation2] sm:$0xff] %vm181, %v1013
    // Predicated region
    $region26: #{tpu_custom_call.1} parent=1 // pred_check
      _
    $region27: #{tpu_custom_call.1} parent=1 // pred_check_branch
      %1132 = sbr.rel (0) target = $region29
    $region28: #{tpu_custom_call.1} parent=1 // pred_region
      _
    $region29: #{tpu_custom_call.1} parent=1 // pred_fallthru
      _
    // Predicated region
    $region30: #{tpu_custom_call.1} parent=1 // pred_check
      _
    $region31: #{tpu_custom_call.1} parent=1 // pred_check_branch
      %1134 = sbr.rel (0) target = $region33
    $region32: #{tpu_custom_call.1} parent=1 // pred_region
      %s1136 = ssub.s32 128, 128
      %1137 = vsyncadd [#allocation3], %s1136
      %s1139 = sshll.u32 [#allocation2], 4
      %s1140 = int_to_ptr.vmem [resolvable:$true] %s1139
      %1142 = dma.vmem_to_hbm [thread:$0]  %s1140, 128, %s7, [#allocation3]
    $region33: #{tpu_custom_call.1} parent=1 // pred_fallthru
      _
    // Predicated region
    $region34: #{tpu_custom_call.1} parent=1 // pred_check
      _
    $region35: #{tpu_custom_call.1} parent=1 // pred_check_branch
      %1144 = sbr.rel (0) target = $region37
    $region36: #{tpu_custom_call.1} parent=1 // pred_region
      _
    $region37: #{tpu_custom_call.1} parent=1 // pred_fallthru
      _
    // Predicated region
    $region38: #{tpu_custom_call.1} parent=1 // pred_check
      _
    $region39: #{tpu_custom_call.1} parent=1 // pred_check_branch
      %1146 = sbr.rel (0) target = $region41
    $region40: #{tpu_custom_call.1} parent=1 // pred_region
      %1147 = dma.done [#allocation3], 128
    $region41: #{tpu_custom_call.1} parent=1 // pred_fallthru
      _
    %1148 = vsyncpa [#allocation3], 1

</llo_original>
